<compile_context>
chip_gen: v7x
topology: tpu7x:2x2x1
jax: 0.10.0
libtpu: 0.0.40
codegen_flags: <defaults>
</compile_context>

<pallas_src>
import math
import numpy as np
import jax
import jax.numpy as jnp
from jax.experimental import pallas as pl
from jax.experimental.pallas import tpu as pltpu

HI = jax.lax.Precision.HIGHEST  # only used by the pure-JAX f32 reference


def make_pam_kernel(B_blk, N, C):
    """Kernel over one batch-block of B_blk images, each with N = H*W tokens."""

    def kernel(xcol_ref, wconv_ref, bconv_ref, wq_ref, bq_ref, wk_ref, bk_ref,
               wv_ref, bv_ref, wo_ref, bo_ref, out_ref):
        f32 = jnp.float32
        bf16 = jnp.bfloat16

        # ---- 3x3 "same" conv: ONE im2col MXU matmul over B_blk*N rows ----
        xcol = xcol_ref[...].reshape(B_blk * N, 9 * C)               # bf16
        y = jnp.dot(xcol, wconv_ref[...],
                    preferred_element_type=f32) + bconv_ref[...]     # (B*N, C) f32
        y16 = y.astype(bf16)

        # ---- Q/K/V projections (1/sqrt(d_k) already folded into wq/bq) ----
        q = jnp.dot(y16, wq_ref[...], preferred_element_type=f32) + bq_ref[...]
        k = jnp.dot(y16, wk_ref[...], preferred_element_type=f32) + bk_ref[...]
        v = jnp.dot(y16, wv_ref[...], preferred_element_type=f32) + bv_ref[...]
        qb = q.astype(bf16).reshape(B_blk, N, C)
        kb = k.astype(bf16).reshape(B_blk, N, C)
        vb = v.astype(bf16).reshape(B_blk, N, C)

        # ---- per-image scaled dot-product self-attention (batched) ----
        att = jnp.einsum("bqc,bkc->bqk", qb, kb,
                         preferred_element_type=f32)                 # (B, N, N) f32
        att = att - jnp.max(att, axis=-1, keepdims=True)
        p = jnp.exp(att)
        # nn.Dropout(p=0.1) on the attention weights is identity in eval mode.
        inv = pl.reciprocal(jnp.sum(p, axis=-1, keepdims=True), approx=True)
        o = jnp.einsum("bqk,bkc->bqc", p.astype(bf16), vb,
                       preferred_element_type=f32)                   # (B, N, C) f32
        o = o * inv                 # softmax denominator folded into the output

        # ---- output projection ----
        out = jnp.dot(o.astype(bf16).reshape(B_blk * N, C), wo_ref[...],
                      preferred_element_type=f32) + bo_ref[...]      # (B*N, C) f32
        out_ref[...] = out.reshape(B_blk, N, C).astype(out_ref.dtype)

    return kernel


def _pick_batch_block(bs, N, C, vmem_budget_bytes=20 << 20):
    """Largest batch block that fits a VMEM budget, preferring an even grid of
    length >= 2 so both v7x TensorCores get balanced halves."""
    per_img = (2 * (N * 9 * C * 2)       # double-buffered bf16 im2col block
               + 2 * (N * N * 4)         # f32 scores + probs
               + 8 * (N * C * 4))        # y/q/k/v/o/out activations
    cap = max(1, vmem_budget_bytes // max(per_img, 1))
    divisors = [d for d in range(1, bs + 1) if bs % d == 0 and d <= cap] or [1]
    even = [d for d in divisors if (bs // d) % 2 == 0 and (bs // d) >= 2]
    return max(even) if even else max(divisors)


def position_attention_module(x_nchw, params, b_blk=None):
    """Pallas implementation of PositionAttentionModule.forward (eval mode)."""
    bs, C, H, W = x_nchw.shape
    N = H * W
    if b_blk is None:
        b_blk = _pick_batch_block(bs, N, C)
    assert bs % b_blk == 0

    # Wrapper-side layout plumbing only (no compute): NCHW->NHWC, pad by 1,
    # 9-tap im2col, bf16 so the dominant HBM stream is half-width.
    x_nhwc = jnp.transpose(x_nchw, (0, 2, 3, 1)).astype(jnp.bfloat16)
    xpad = jnp.pad(x_nhwc, ((0, 0), (1, 1), (1, 1), (0, 0)))
    slabs = [xpad[:, dy:dy + H, dx:dx + W, :]
             for dy in range(3) for dx in range(3)]                   # 9 x (bs,H,W,C)
    xcol = jnp.concatenate(slabs, axis=-1).reshape(bs, N, 9 * C)      # (bs, N, 9C) bf16

    kernel = make_pam_kernel(b_blk, N, C)

    def const(shape):
        nd = len(shape)
        return pl.BlockSpec(shape, lambda b, _nd=nd: (0,) * _nd)

    flops = bs * (2 * N * 9 * C * C        # conv im2col matmul
                  + 3 * 2 * N * C * C      # Q, K, V projections
                  + 2 * N * N * C          # q @ k^T
                  + 2 * N * N * C          # p @ v
                  + 2 * N * C * C)         # output projection
    transcendentals = bs * (N * N + N)     # exp + approx reciprocal
    bytes_accessed = (bs * N * 9 * C * 2             # bf16 im2col read
                      + (9 * C + 4 * C) * C * 2      # bf16 weights
                      + 5 * C * 4                    # f32 biases
                      + bs * N * C * 4)              # f32 output writeback

    out = pl.pallas_call(
        kernel,
        out_shape=jax.ShapeDtypeStruct((bs, N, C), jnp.float32),
        grid_spec=pltpu.PrefetchScalarGridSpec(
            num_scalar_prefetch=0,
            grid=(bs // b_blk,),
            in_specs=[
                pl.BlockSpec((b_blk, N, 9 * C), lambda b: (b, 0, 0)),  # im2col input
                const((9 * C, C)),      # conv weight, tap-major (9*Cin, Cout), bf16
                const((1, C)),          # conv bias, f32
                const((C, C)),          # Wq (scale pre-folded), bf16
                const((1, C)),          # bq (scale pre-folded), f32
                const((C, C)),          # Wk, bf16
                const((1, C)),          # bk, f32
                const((C, C)),          # Wv, bf16
                const((1, C)),          # bv, f32
                const((C, C)),          # Wo, bf16
                const((1, C)),          # bo, f32
            ],
            out_specs=pl.BlockSpec((b_blk, N, C), lambda b: (b, 0, 0)),
        ),
        compiler_params=pltpu.CompilerParams(
            dimension_semantics=("parallel",),
            # Fine for small C / toy spatial sizes.  TODO(synk): re-derive for
            # production DANet sizes on v7x (64 MiB VMEM): add an 'arbitrary'
            # grid axis over the 9C contraction with an f32 VMEM accumulator.
            vmem_limit_bytes=32 * 1024 * 1024),
        cost_estimate=pl.CostEstimate(flops=int(flops),
                                      transcendentals=int(transcendentals),
                                      bytes_accessed=int(bytes_accessed)),
    )(xcol,
      params["w_conv_col"], params["b_conv"],
      params["w_q"], params["b_q"],
      params["w_k"], params["b_k"],
      params["w_v"], params["b_v"],
      params["w_o"], params["b_o"])
    return out


def init_params(key, d_model):
    """Deterministic synthetic parameters (shapes follow the torch module)."""
    ks = jax.random.split(key, 10)
    s = 0.08
    f32, bf16 = jnp.float32, jnp.bfloat16
    w_conv_pt = jax.random.normal(ks[0], (d_model, d_model, 3, 3), f32) * s  # (O, I, kh, kw)
    b_conv = jax.random.normal(ks[1], (d_model,), f32) * s
    w_q_pt = jax.random.normal(ks[2], (d_model, d_model), f32) * s           # (out, in)
    w_k_pt = jax.random.normal(ks[3], (d_model, d_model), f32) * s
    w_v_pt = jax.random.normal(ks[4], (d_model, d_model), f32) * s
    w_o_pt = jax.random.normal(ks[5], (d_model, d_model), f32) * s
    b_q = jax.random.normal(ks[6], (d_model,), f32) * s
    b_k = jax.random.normal(ks[7], (d_model,), f32) * s
    b_v = jax.random.normal(ks[8], (d_model,), f32) * s
    b_o = jax.random.normal(ks[9], (d_model,), f32) * s

    scale = 1.0 / math.sqrt(d_model)   # d_k == d_model, h == 1

    # Kernel layouts: bf16 weights (fast MXU path), f32 biases (added to the
    # f32 accumulators).  im2col conv weight is (kh, kw, Cin, Cout) flattened
    # to (9*Cin, Cout); tap order matches the wrapper's slab concat order.
    w_conv_col = jnp.transpose(w_conv_pt, (2, 3, 1, 0)).reshape(9 * d_model, d_model)

    return {
        "w_conv_col": w_conv_col.astype(bf16),
        "b_conv": b_conv.reshape(1, d_model),
        # 1/sqrt(d_k) folded into the Q projection (weight + bias).
        "w_q": (w_q_pt.T * scale).astype(bf16),
        "b_q": (b_q * scale).reshape(1, d_model),
        "w_k": w_k_pt.T.astype(bf16),
        "b_k": b_k.reshape(1, d_model),
        "w_v": w_v_pt.T.astype(bf16),
        "b_v": b_v.reshape(1, d_model),
        "w_o": w_o_pt.T.astype(bf16),
        "b_o": b_o.reshape(1, d_model),
        # Unscaled f32 copies for the pure-JAX reference.
        "ref": {
            "w_conv_pt": w_conv_pt, "b_conv": b_conv,
            "w_q": w_q_pt.T, "b_q": b_q,
            "w_k": w_k_pt.T, "b_k": b_k,
            "w_v": w_v_pt.T, "b_v": b_v,
            "w_o": w_o_pt.T, "b_o": b_o,
        },
    }


def reference(x_nchw, params):
    """Pure-JAX f32 replica of the torch forward (eval mode) for validation."""
    r = params["ref"]
    bs, C, H, W = x_nchw.shape
    N = H * W
    y = jax.lax.conv_general_dilated(
        x_nchw, r["w_conv_pt"], window_strides=(1, 1), padding="SAME",
        dimension_numbers=("NCHW", "OIHW", "NCHW"), precision=HI)
    y = y + r["b_conv"].reshape(1, C, 1, 1)
    y = y.reshape(bs, C, N).transpose(0, 2, 1)                        # (bs, N, C)
    q = jnp.einsum("bnc,cd->bnd", y, r["w_q"], precision=HI) + r["b_q"]
    k = jnp.einsum("bnc,cd->bnd", y, r["w_k"], precision=HI) + r["b_k"]
    v = jnp.einsum("bnc,cd->bnd", y, r["w_v"], precision=HI) + r["b_v"]
    att = jnp.einsum("bnd,bmd->bnm", q, k, precision=HI) / math.sqrt(C)
    att = jax.nn.softmax(att, axis=-1)
    o = jnp.einsum("bnm,bmd->bnd", att, v, precision=HI)
    out = jnp.einsum("bnd,de->bne", o, r["w_o"], precision=HI) + r["b_o"]
    return out


if __name__ == "__main__":
    bs, d_model, H, W = 4, 32, 8, 8          # -> B_blk=2, grid=(2,), even for v7x
    key = jax.random.PRNGKey(0)
    kx, kp = jax.random.split(key)
    x = jax.random.normal(kx, (bs, d_model, H, W), jnp.float32)       # NCHW, like torch
    params = init_params(kp, d_model)

    out = position_attention_module(x, params)
    jax.block_until_ready(out)

    ref = reference(x, params)
    # Kernel uses bf16 operands on every matmul (f32 accumulation) plus an
    # approximate EUP reciprocal; validate against the f32 reference at a
    # bf16-appropriate tolerance.
    np.testing.assert_allclose(np.asarray(out), np.asarray(ref), rtol=3e-2, atol=3e-2)
    print("KERNEL_OK")
</pallas_src>

<mosaic_0001>
module attributes {stable_mosaic.version = 11 : i64} {
  func.func @kernel(%arg0: i32, %arg1: memref<2x64x288xbf16, #tpu.memory_space<vmem>>, %arg2: memref<288x32xbf16, #tpu.memory_space<vmem>>, %arg3: memref<1x32xf32, #tpu.memory_space<vmem>>, %arg4: memref<32x32xbf16, #tpu.memory_space<vmem>>, %arg5: memref<1x32xf32, #tpu.memory_space<vmem>>, %arg6: memref<32x32xbf16, #tpu.memory_space<vmem>>, %arg7: memref<1x32xf32, #tpu.memory_space<vmem>>, %arg8: memref<32x32xbf16, #tpu.memory_space<vmem>>, %arg9: memref<1x32xf32, #tpu.memory_space<vmem>>, %arg10: memref<32x32xbf16, #tpu.memory_space<vmem>>, %arg11: memref<1x32xf32, #tpu.memory_space<vmem>>, %arg12: memref<2x64x32xf32, #tpu.memory_space<vmem>>) attributes {dimension_semantics = [#tpu.dimension_semantics<parallel>], iteration_bounds = array<i64: 2>, scalar_prefetch = 0 : i64, scratch_operands = 0 : i64, tpu.core_type = #tpu.core_type<tc>, window_params = [{transform_indices = @transform_0, window_bounds = array<i64: 2, 64, 288>}, {pipeline_mode = #tpu.pipeline_mode<synchronous>, transform_indices = @transform_1, window_bounds = array<i64: 288, 32>}, {pipeline_mode = #tpu.pipeline_mode<synchronous>, transform_indices = @transform_2, window_bounds = array<i64: 1, 32>}, {pipeline_mode = #tpu.pipeline_mode<synchronous>, transform_indices = @transform_3, window_bounds = array<i64: 32, 32>}, {pipeline_mode = #tpu.pipeline_mode<synchronous>, transform_indices = @transform_4, window_bounds = array<i64: 1, 32>}, {pipeline_mode = #tpu.pipeline_mode<synchronous>, transform_indices = @transform_5, window_bounds = array<i64: 32, 32>}, {pipeline_mode = #tpu.pipeline_mode<synchronous>, transform_indices = @transform_6, window_bounds = array<i64: 1, 32>}, {pipeline_mode = #tpu.pipeline_mode<synchronous>, transform_indices = @transform_7, window_bounds = array<i64: 32, 32>}, {pipeline_mode = #tpu.pipeline_mode<synchronous>, transform_indices = @transform_8, window_bounds = array<i64: 1, 32>}, {pipeline_mode = #tpu.pipeline_mode<synchronous>, transform_indices = @transform_9, window_bounds = array<i64: 32, 32>}, {pipeline_mode = #tpu.pipeline_mode<synchronous>, transform_indices = @transform_10, window_bounds = array<i64: 1, 32>}, {transform_indices = @transform_11, window_bounds = array<i64: 2, 64, 32>}]} {
    %c0 = arith.constant 0 : index
    %c0_0 = arith.constant 0 : index
    %c0_1 = arith.constant 0 : index
    %0 = vector.load %arg1[%c0, %c0_0, %c0_1] : memref<2x64x288xbf16, #tpu.memory_space<vmem>>, vector<2x64x288xbf16>
    %1 = vector.shape_cast %0 : vector<2x64x288xbf16> to vector<128x288xbf16>
    %c0_2 = arith.constant 0 : index
    %c0_3 = arith.constant 0 : index
    %2 = vector.load %arg2[%c0_2, %c0_3] : memref<288x32xbf16, #tpu.memory_space<vmem>>, vector<288x32xbf16>
    %cst = arith.constant dense<0.000000e+00> : vector<128x32xf32>
    %3 = tpu.matmul %1, %2, %cst {dimension_numbers = #tpu.dot_dimension_numbers<[1], [0], [0], [1], [0, 0, 1, 1], [], []>} : vector<128x288xbf16>, vector<288x32xbf16>, vector<128x32xf32> -> vector<128x32xf32>
    %c0_4 = arith.constant 0 : index
    %c0_5 = arith.constant 0 : index
    %4 = vector.load %arg3[%c0_4, %c0_5] : memref<1x32xf32, #tpu.memory_space<vmem>>, vector<1x32xf32>
    %5 = vector.broadcast %4 : vector<1x32xf32> to vector<128x32xf32>
    %6 = arith.addf %3, %5 : vector<128x32xf32>
    %7 = arith.truncf %6 : vector<128x32xf32> to vector<128x32xbf16>
    %c0_6 = arith.constant 0 : index
    %c0_7 = arith.constant 0 : index
    %8 = vector.load %arg4[%c0_6, %c0_7] : memref<32x32xbf16, #tpu.memory_space<vmem>>, vector<32x32xbf16>
    %cst_8 = arith.constant dense<0.000000e+00> : vector<128x32xf32>
    %9 = tpu.matmul %7, %8, %cst_8 {dimension_numbers = #tpu.dot_dimension_numbers<[1], [0], [0], [1], [0, 0, 1, 1], [], []>} : vector<128x32xbf16>, vector<32x32xbf16>, vector<128x32xf32> -> vector<128x32xf32>
    %c0_9 = arith.constant 0 : index
    %c0_10 = arith.constant 0 : index
    %10 = vector.load %arg5[%c0_9, %c0_10] : memref<1x32xf32, #tpu.memory_space<vmem>>, vector<1x32xf32>
    %11 = vector.broadcast %10 : vector<1x32xf32> to vector<128x32xf32>
    %12 = arith.addf %9, %11 : vector<128x32xf32>
    %c0_11 = arith.constant 0 : index
    %c0_12 = arith.constant 0 : index
    %13 = vector.load %arg6[%c0_11, %c0_12] : memref<32x32xbf16, #tpu.memory_space<vmem>>, vector<32x32xbf16>
    %cst_13 = arith.constant dense<0.000000e+00> : vector<128x32xf32>
    %14 = tpu.matmul %7, %13, %cst_13 {dimension_numbers = #tpu.dot_dimension_numbers<[1], [0], [0], [1], [0, 0, 1, 1], [], []>} : vector<128x32xbf16>, vector<32x32xbf16>, vector<128x32xf32> -> vector<128x32xf32>
    %c0_14 = arith.constant 0 : index
    %c0_15 = arith.constant 0 : index
    %15 = vector.load %arg7[%c0_14, %c0_15] : memref<1x32xf32, #tpu.memory_space<vmem>>, vector<1x32xf32>
    %16 = vector.broadcast %15 : vector<1x32xf32> to vector<128x32xf32>
    %17 = arith.addf %14, %16 : vector<128x32xf32>
    %c0_16 = arith.constant 0 : index
    %c0_17 = arith.constant 0 : index
    %18 = vector.load %arg8[%c0_16, %c0_17] : memref<32x32xbf16, #tpu.memory_space<vmem>>, vector<32x32xbf16>
    %cst_18 = arith.constant dense<0.000000e+00> : vector<128x32xf32>
    %19 = tpu.matmul %7, %18, %cst_18 {dimension_numbers = #tpu.dot_dimension_numbers<[1], [0], [0], [1], [0, 0, 1, 1], [], []>} : vector<128x32xbf16>, vector<32x32xbf16>, vector<128x32xf32> -> vector<128x32xf32>
    %c0_19 = arith.constant 0 : index
    %c0_20 = arith.constant 0 : index
    %20 = vector.load %arg9[%c0_19, %c0_20] : memref<1x32xf32, #tpu.memory_space<vmem>>, vector<1x32xf32>
    %21 = vector.broadcast %20 : vector<1x32xf32> to vector<128x32xf32>
    %22 = arith.addf %19, %21 : vector<128x32xf32>
    %23 = arith.truncf %12 : vector<128x32xf32> to vector<128x32xbf16>
    %24 = vector.shape_cast %23 : vector<128x32xbf16> to vector<2x64x32xbf16>
    %25 = arith.truncf %17 : vector<128x32xf32> to vector<128x32xbf16>
    %26 = vector.shape_cast %25 : vector<128x32xbf16> to vector<2x64x32xbf16>
    %27 = arith.truncf %22 : vector<128x32xf32> to vector<128x32xbf16>
    %28 = vector.shape_cast %27 : vector<128x32xbf16> to vector<2x64x32xbf16>
    "tpu.trace_start"() <{level = 10 : i32, message = "bqc,bkc->bqk"}> : () -> ()
    %cst_21 = arith.constant dense<0.000000e+00> : vector<2x64x64xf32>
    %29 = tpu.matmul %24, %26, %cst_21 {dimension_numbers = #tpu.dot_dimension_numbers<[2], [2], [1], [1], [0, 0, 0, 1, 1, 1], [0], [0]>} : vector<2x64x32xbf16>, vector<2x64x32xbf16>, vector<2x64x64xf32> -> vector<2x64x64xf32>
    "tpu.trace_stop"() : () -> ()
    %cst_22 = arith.constant dense<0xFF800000> : vector<2x64xf32>
    %30 = vector.multi_reduction <maximumf>, %29, %cst_22 [2] : vector<2x64x64xf32> to vector<2x64xf32>
    %31 = vector.shape_cast %30 : vector<2x64xf32> to vector<2x64x1xf32>
    %32 = vector.broadcast %31 : vector<2x64x1xf32> to vector<2x64x64xf32>
    %33 = arith.subf %29, %32 : vector<2x64x64xf32>
    %34 = math.exp %33 : vector<2x64x64xf32>
    %cst_23 = arith.constant dense<0.000000e+00> : vector<2x64xf32>
    %35 = vector.multi_reduction <add>, %34, %cst_23 [2] : vector<2x64x64xf32> to vector<2x64xf32>
    %36 = vector.shape_cast %35 : vector<2x64xf32> to vector<2x64x1xf32>
    %37 = tpu.reciprocal %36 {approx = true} : vector<2x64x1xf32> -> vector<2x64x1xf32>
    %38 = arith.truncf %34 : vector<2x64x64xf32> to vector<2x64x64xbf16>
    "tpu.trace_start"() <{level = 10 : i32, message = "bqk,bkc->bqc"}> : () -> ()
    %cst_24 = arith.constant dense<0.000000e+00> : vector<2x64x32xf32>
    %39 = tpu.matmul %38, %28, %cst_24 {dimension_numbers = #tpu.dot_dimension_numbers<[2], [1], [1], [2], [0, 0, 0, 1, 1, 2], [0], [0]>} : vector<2x64x64xbf16>, vector<2x64x32xbf16>, vector<2x64x32xf32> -> vector<2x64x32xf32>
    "tpu.trace_stop"() : () -> ()
    %40 = vector.broadcast %37 : vector<2x64x1xf32> to vector<2x64x32xf32>
    %41 = arith.mulf %39, %40 : vector<2x64x32xf32>
    %42 = arith.truncf %41 : vector<2x64x32xf32> to vector<2x64x32xbf16>
    %43 = vector.shape_cast %42 : vector<2x64x32xbf16> to vector<128x32xbf16>
    %c0_25 = arith.constant 0 : index
    %c0_26 = arith.constant 0 : index
    %44 = vector.load %arg10[%c0_25, %c0_26] : memref<32x32xbf16, #tpu.memory_space<vmem>>, vector<32x32xbf16>
    %cst_27 = arith.constant dense<0.000000e+00> : vector<128x32xf32>
    %45 = tpu.matmul %43, %44, %cst_27 {dimension_numbers = #tpu.dot_dimension_numbers<[1], [0], [0], [1], [0, 0, 1, 1], [], []>} : vector<128x32xbf16>, vector<32x32xbf16>, vector<128x32xf32> -> vector<128x32xf32>
    %c0_28 = arith.constant 0 : index
    %c0_29 = arith.constant 0 : index
    %46 = vector.load %arg11[%c0_28, %c0_29] : memref<1x32xf32, #tpu.memory_space<vmem>>, vector<1x32xf32>
    %47 = vector.broadcast %46 : vector<1x32xf32> to vector<128x32xf32>
    %48 = arith.addf %45, %47 : vector<128x32xf32>
    %49 = vector.shape_cast %48 : vector<128x32xf32> to vector<2x64x32xf32>
    %c0_30 = arith.constant 0 : index
    %c0_31 = arith.constant 0 : index
    %c0_32 = arith.constant 0 : index
    %50 = vector.load %arg12[%c0_30, %c0_31, %c0_32] : memref<2x64x32xf32, #tpu.memory_space<vmem>>, vector<2x64x32xf32>
    tpu.vector_store %arg12[%c0_30, %c0_31, %c0_32], %49 {strides = array<i32>} : memref<2x64x32xf32, #tpu.memory_space<vmem>>, vector<2x64x32xf32>,
    return
  }
  func.func @transform_0(%arg0: i32) -> (i32, i32, i32) {
    %c0_i32 = arith.constant 0 : i32
    %c0_i32_0 = arith.constant 0 : i32
    %c0_i32_1 = arith.constant 0 : i32
    return %arg0, %c0_i32, %c0_i32_0 : i32, i32, i32
  }
  func.func @transform_1(%arg0: i32) -> (i32, i32) {
    %c0_i32 = arith.constant 0 : i32
    %c0_i32_0 = arith.constant 0 : i32
    %c0_i32_1 = arith.constant 0 : i32
    return %c0_i32, %c0_i32_0 : i32, i32
  }
  func.func @transform_2(%arg0: i32) -> (i32, i32) {
    %c0_i32 = arith.constant 0 : i32
    %c0_i32_0 = arith.constant 0 : i32
    %c0_i32_1 = arith.constant 0 : i32
    return %c0_i32, %c0_i32_0 : i32, i32
  }
  func.func @transform_3(%arg0: i32) -> (i32, i32) {
    %c0_i32 = arith.constant 0 : i32
    %c0_i32_0 = arith.constant 0 : i32
    %c0_i32_1 = arith.constant 0 : i32
    return %c0_i32, %c0_i32_0 : i32, i32
  }
  func.func @transform_4(%arg0: i32) -> (i32, i32) {
    %c0_i32 = arith.constant 0 : i32
    %c0_i32_0 = arith.constant 0 : i32
    %c0_i32_1 = arith.constant 0 : i32
    return %c0_i32, %c0_i32_0 : i32, i32
  }
  func.func @transform_5(%arg0: i32) -> (i32, i32) {
    %c0_i32 = arith.constant 0 : i32
    %c0_i32_0 = arith.constant 0 : i32
    %c0_i32_1 = arith.constant 0 : i32
    return %c0_i32, %c0_i32_0 : i32, i32
  }
  func.func @transform_6(%arg0: i32) -> (i32, i32) {
    %c0_i32 = arith.constant 0 : i32
    %c0_i32_0 = arith.constant 0 : i32
    %c0_i32_1 = arith.constant 0 : i32
    return %c0_i32, %c0_i32_0 : i32, i32
  }
  func.func @transform_7(%arg0: i32) -> (i32, i32) {
    %c0_i32 = arith.constant 0 : i32
    %c0_i32_0 = arith.constant 0 : i32
    %c0_i32_1 = arith.constant 0 : i32
    return %c0_i32, %c0_i32_0 : i32, i32
  }
  func.func @transform_8(%arg0: i32) -> (i32, i32) {
    %c0_i32 = arith.constant 0 : i32
    %c0_i32_0 = arith.constant 0 : i32
    %c0_i32_1 = arith.constant 0 : i32
    return %c0_i32, %c0_i32_0 : i32, i32
  }
  func.func @transform_9(%arg0: i32) -> (i32, i32) {
    %c0_i32 = arith.constant 0 : i32
    %c0_i32_0 = arith.constant 0 : i32
    %c0_i32_1 = arith.constant 0 : i32
    return %c0_i32, %c0_i32_0 : i32, i32
  }
  func.func @transform_10(%arg0: i32) -> (i32, i32) {
    %c0_i32 = arith.constant 0 : i32
    %c0_i32_0 = arith.constant 0 : i32
    %c0_i32_1 = arith.constant 0 : i32
    return %c0_i32, %c0_i32_0 : i32, i32
  }
  func.func @transform_11(%arg0: i32) -> (i32, i32, i32) {
    %c0_i32 = arith.constant 0 : i32
    %c0_i32_0 = arith.constant 0 : i32
    %c0_i32_1 = arith.constant 0 : i32
    return %arg0, %c0_i32, %c0_i32_0 : i32, i32, i32
  }
}

</mosaic_0001>

<llo_original>
// kernel: tpu_custom_call.1
$region0: #{tpu_custom_call.1}
  #allocation0 [shape = 'u32[]', space=smem, size = 0x4, offset = 0x4, fixed_abs, tag = 'smem constant byte address 0x4 - core index']
  #allocation1 [shape = 'u32[144,128]{1,0:T(1,128)}', space=vmem, size = 0x12000, scoped, tag = 'internal scratch']
  %s0 = inlined_call_operand.hbm [shape: bf16[4,64,288], index: 0, kind: input, shape index: {}]
  %s1 = inlined_call_operand.vmem [shape: bf16[288,32], index: 1, kind: input, shape index: {}]
  %s2 = inlined_call_operand.vmem [shape: f32[1,32], index: 2, kind: input, shape index: {}]
  %s3 = inlined_call_operand.vmem [shape: bf16[32,32], index: 3, kind: input, shape index: {}]
  %s4 = inlined_call_operand.vmem [shape: f32[1,32], index: 4, kind: input, shape index: {}]
  %s5 = inlined_call_operand.vmem [shape: bf16[32,32], index: 5, kind: input, shape index: {}]
  %s6 = inlined_call_operand.vmem [shape: f32[1,32], index: 6, kind: input, shape index: {}]
  %s7 = inlined_call_operand.vmem [shape: bf16[32,32], index: 7, kind: input, shape index: {}]
  %s8 = inlined_call_operand.vmem [shape: f32[1,32], index: 8, kind: input, shape index: {}]
  %s9 = inlined_call_operand.vmem [shape: bf16[32,32], index: 9, kind: input, shape index: {}]
  %s10 = inlined_call_operand.vmem [shape: f32[1,32], index: 10, kind: input, shape index: {}]
  %s11 = inlined_call_operand.vmem [shape: f32[4,64,32], index: 11, kind: output, shape index: {}]
  %s12 = sld [smem:[#allocation0]]
  $region81: #{tpu_custom_call.1} parent=0
    _
  %s14 = ssub.s32 1, %s12
  %s15 = scalar_select 0, %s14, %s12
  $region1: #{tpu_custom_call.1} parent=0
    #allocation2 [shape = 'u8[196608]{0}', space=vmem, size = 0x30000, scoped, tag = 'input window, operand 0']
    #allocation3 [shape = 's32[2]{0}', space=sflag, size = 0x8, scoped, tag = 'scoped memory for tpu_custom_call.1']
    %16 = vsyncpa [#allocation3], 0
    %s17 = scalar_lea.sflag [#allocation3], 1
    %18 = vsyncpa %s17, 0
    loop: start=0, step=1, limit=4
    $region2: #{tpu_custom_call.1} parent=1 // loop_pre_header
      _
    $region3: #{tpu_custom_call.1} parent=1 // loop_header
      %s20 = sphi 0, %s24
      %p21 = scmp.ge.s32.totalorder %s20, 4
      %s30 = sphi 0, %s32
      %s33 = sphi 0, %s30
      %s34 = sphi 0, %s33
      %s50 = sphi 0, %s34
      %s54 = sphi 0, %s54
      %s56 = sphi 0, %s54
      %s57 = sphi 0, %s56
      %s71 = sphi 0, %s57
      %s75 = sphi 0, %s75
      %s77 = sphi 0, %s75
      %s78 = sphi 0, %s77
      %s92 = sphi 0, %s78
      %s96 = sphi 0, %s96
      %s98 = sphi 0, %s96
      %s99 = sphi 0, %s98
      %s113 = sphi 0, %s99
      %s117 = sphi 0, %s117
      %s119 = sphi 0, %s117
      %s120 = sphi 0, %s119
      %s134 = sphi 0, %s120
      %s138 = sphi 0, %s138
      %s140 = sphi 0, %s138
      %s141 = sphi 0, %s140
      %s155 = sphi 0, %s141
      %s159 = sphi 0, %s159
      %s161 = sphi 0, %s159
      %s162 = sphi 0, %s161
      %s176 = sphi 0, %s162
      %s180 = sphi 0, %s180
      %s182 = sphi 0, %s180
      %s183 = sphi 0, %s182
      %s197 = sphi 0, %s183
      %s201 = sphi 0, %s201
      %s203 = sphi 0, %s201
      %s204 = sphi 0, %s203
      %s218 = sphi 0, %s204
      %s222 = sphi 0, %s222
      %s224 = sphi 0, %s222
      %s225 = sphi 0, %s224
      %s239 = sphi 0, %s225
      %s243 = sphi 0, %s243
      %s245 = sphi 0, %s243
      %s246 = sphi 0, %s245
      %s260 = sphi 0, %s246
      %s266 = sphi 0, %s268
      %s269 = sphi 0, %s266
      %s270 = sphi 0, %s269
      %s286 = sphi 0, %s270
    $region4: #{tpu_custom_call.1} parent=1 // loop_header_branch
      %23 = sbr.rel (%p21) target = $region8
    $region5: #{tpu_custom_call.1} parent=1 // loop_body
      %s25 = ssub.s32 %s20, 1
      %s26 = ssub.s32 %s20, 2
      %s27 = sadd.s32 %s20, 1
      %s28 = ssub.s32 %s20, %s27
      %p29 = scmp.eq.s32.totalorder %s28, 0
      %s31 = sadd.s32 %s30, 1
      %s32 = scalar_select %p29, %s30, %s31
      %p35 = pneg %p29
      %p36 = scmp.eq.s32.totalorder %s20, 1
      %p37 = por %p35, %p36
      %p38 = scmp.ne.s32.totalorder %s30, %s33
      %p39 = scmp.eq.s32.totalorder %s20, 0
      %p40 = por %p38, %p39
      %p41 = scmp.ne.s32.totalorder %s30, %s33
      %p42 = scmp.eq.s32.totalorder %s25, 1
      %p43 = por %p41, %p42
      %p44 = scmp.ne.s32.totalorder %s33, %s34
      %p45 = scmp.eq.s32.totalorder %s25, 0
      %p46 = por %p44, %p45
      %p47 = scmp.ne.s32.totalorder %s33, %s34
      %p48 = scmp.eq.s32.totalorder %s26, 1
      %p49 = por %p47, %p48
      %p51 = scmp.ne.s32.totalorder %s34, %s50
      %p52 = scmp.eq.s32.totalorder %s26, 0
      %p53 = por %p51, %p52
      %s55 = sadd.s32 %s54, 1
      %p58 = scmp.eq.s32.totalorder %s20, 1
      %p59 = scmp.ne.s32.totalorder %s54, %s56
      %p60 = scmp.eq.s32.totalorder %s20, 0
      %p61 = por %p59, %p60
      %p62 = scmp.ne.s32.totalorder %s54, %s56
      %p63 = scmp.eq.s32.totalorder %s25, 1
      %p64 = por %p62, %p63
      %p65 = scmp.ne.s32.totalorder %s56, %s57
      %p66 = scmp.eq.s32.totalorder %s25, 0
      %p67 = por %p65, %p66
      %p68 = scmp.ne.s32.totalorder %s56, %s57
      %p69 = scmp.eq.s32.totalorder %s26, 1
      %p70 = por %p68, %p69
      %p72 = scmp.ne.s32.totalorder %s57, %s71
      %p73 = scmp.eq.s32.totalorder %s26, 0
      %p74 = por %p72, %p73
      %s76 = sadd.s32 %s75, 1
      %p79 = scmp.eq.s32.totalorder %s20, 1
      %p80 = scmp.ne.s32.totalorder %s75, %s77
      %p81 = scmp.eq.s32.totalorder %s20, 0
      %p82 = por %p80, %p81
      %p83 = scmp.ne.s32.totalorder %s75, %s77
      %p84 = scmp.eq.s32.totalorder %s25, 1
      %p85 = por %p83, %p84
      %p86 = scmp.ne.s32.totalorder %s77, %s78
      %p87 = scmp.eq.s32.totalorder %s25, 0
      %p88 = por %p86, %p87
      %p89 = scmp.ne.s32.totalorder %s77, %s78
      %p90 = scmp.eq.s32.totalorder %s26, 1
      %p91 = por %p89, %p90
      %p93 = scmp.ne.s32.totalorder %s78, %s92
      %p94 = scmp.eq.s32.totalorder %s26, 0
      %p95 = por %p93, %p94
      %s97 = sadd.s32 %s96, 1
      %p100 = scmp.eq.s32.totalorder %s20, 1
      %p101 = scmp.ne.s32.totalorder %s96, %s98
      %p102 = scmp.eq.s32.totalorder %s20, 0
      %p103 = por %p101, %p102
      %p104 = scmp.ne.s32.totalorder %s96, %s98
      %p105 = scmp.eq.s32.totalorder %s25, 1
      %p106 = por %p104, %p105
      %p107 = scmp.ne.s32.totalorder %s98, %s99
      %p108 = scmp.eq.s32.totalorder %s25, 0
      %p109 = por %p107, %p108
      %p110 = scmp.ne.s32.totalorder %s98, %s99
      %p111 = scmp.eq.s32.totalorder %s26, 1
      %p112 = por %p110, %p111
      %p114 = scmp.ne.s32.totalorder %s99, %s113
      %p115 = scmp.eq.s32.totalorder %s26, 0
      %p116 = por %p114, %p115
      %s118 = sadd.s32 %s117, 1
      %p121 = scmp.eq.s32.totalorder %s20, 1
      %p122 = scmp.ne.s32.totalorder %s117, %s119
      %p123 = scmp.eq.s32.totalorder %s20, 0
      %p124 = por %p122, %p123
      %p125 = scmp.ne.s32.totalorder %s117, %s119
      %p126 = scmp.eq.s32.totalorder %s25, 1
      %p127 = por %p125, %p126
      %p128 = scmp.ne.s32.totalorder %s119, %s120
      %p129 = scmp.eq.s32.totalorder %s25, 0
      %p130 = por %p128, %p129
      %p131 = scmp.ne.s32.totalorder %s119, %s120
      %p132 = scmp.eq.s32.totalorder %s26, 1
      %p133 = por %p131, %p132
      %p135 = scmp.ne.s32.totalorder %s120, %s134
      %p136 = scmp.eq.s32.totalorder %s26, 0
      %p137 = por %p135, %p136
      %s139 = sadd.s32 %s138, 1
      %p142 = scmp.eq.s32.totalorder %s20, 1
      %p143 = scmp.ne.s32.totalorder %s138, %s140
      %p144 = scmp.eq.s32.totalorder %s20, 0
      %p145 = por %p143, %p144
      %p146 = scmp.ne.s32.totalorder %s138, %s140
      %p147 = scmp.eq.s32.totalorder %s25, 1
      %p148 = por %p146, %p147
      %p149 = scmp.ne.s32.totalorder %s140, %s141
      %p150 = scmp.eq.s32.totalorder %s25, 0
      %p151 = por %p149, %p150
      %p152 = scmp.ne.s32.totalorder %s140, %s141
      %p153 = scmp.eq.s32.totalorder %s26, 1
      %p154 = por %p152, %p153
      %p156 = scmp.ne.s32.totalorder %s141, %s155
      %p157 = scmp.eq.s32.totalorder %s26, 0
      %p158 = por %p156, %p157
      %s160 = sadd.s32 %s159, 1
      %p163 = scmp.eq.s32.totalorder %s20, 1
      %p164 = scmp.ne.s32.totalorder %s159, %s161
      %p165 = scmp.eq.s32.totalorder %s20, 0
      %p166 = por %p164, %p165
      %p167 = scmp.ne.s32.totalorder %s159, %s161
      %p168 = scmp.eq.s32.totalorder %s25, 1
      %p169 = por %p167, %p168
      %p170 = scmp.ne.s32.totalorder %s161, %s162
      %p171 = scmp.eq.s32.totalorder %s25, 0
      %p172 = por %p170, %p171
      %p173 = scmp.ne.s32.totalorder %s161, %s162
      %p174 = scmp.eq.s32.totalorder %s26, 1
      %p175 = por %p173, %p174
      %p177 = scmp.ne.s32.totalorder %s162, %s176
      %p178 = scmp.eq.s32.totalorder %s26, 0
      %p179 = por %p177, %p178
      %s181 = sadd.s32 %s180, 1
      %p184 = scmp.eq.s32.totalorder %s20, 1
      %p185 = scmp.ne.s32.totalorder %s180, %s182
      %p186 = scmp.eq.s32.totalorder %s20, 0
      %p187 = por %p185, %p186
      %p188 = scmp.ne.s32.totalorder %s180, %s182
      %p189 = scmp.eq.s32.totalorder %s25, 1
      %p190 = por %p188, %p189
      %p191 = scmp.ne.s32.totalorder %s182, %s183
      %p192 = scmp.eq.s32.totalorder %s25, 0
      %p193 = por %p191, %p192
      %p194 = scmp.ne.s32.totalorder %s182, %s183
      %p195 = scmp.eq.s32.totalorder %s26, 1
      %p196 = por %p194, %p195
      %p198 = scmp.ne.s32.totalorder %s183, %s197
      %p199 = scmp.eq.s32.totalorder %s26, 0
      %p200 = por %p198, %p199
      %s202 = sadd.s32 %s201, 1
      %p205 = scmp.eq.s32.totalorder %s20, 1
      %p206 = scmp.ne.s32.totalorder %s201, %s203
      %p207 = scmp.eq.s32.totalorder %s20, 0
      %p208 = por %p206, %p207
      %p209 = scmp.ne.s32.totalorder %s201, %s203
      %p210 = scmp.eq.s32.totalorder %s25, 1
      %p211 = por %p209, %p210
      %p212 = scmp.ne.s32.totalorder %s203, %s204
      %p213 = scmp.eq.s32.totalorder %s25, 0
      %p214 = por %p212, %p213
      %p215 = scmp.ne.s32.totalorder %s203, %s204
      %p216 = scmp.eq.s32.totalorder %s26, 1
      %p217 = por %p215, %p216
      %p219 = scmp.ne.s32.totalorder %s204, %s218
      %p220 = scmp.eq.s32.totalorder %s26, 0
      %p221 = por %p219, %p220
      %s223 = sadd.s32 %s222, 1
      %p226 = scmp.eq.s32.totalorder %s20, 1
      %p227 = scmp.ne.s32.totalorder %s222, %s224
      %p228 = scmp.eq.s32.totalorder %s20, 0
      %p229 = por %p227, %p228
      %p230 = scmp.ne.s32.totalorder %s222, %s224
      %p231 = scmp.eq.s32.totalorder %s25, 1
      %p232 = por %p230, %p231
      %p233 = scmp.ne.s32.totalorder %s224, %s225
      %p234 = scmp.eq.s32.totalorder %s25, 0
      %p235 = por %p233, %p234
      %p236 = scmp.ne.s32.totalorder %s224, %s225
      %p237 = scmp.eq.s32.totalorder %s26, 1
      %p238 = por %p236, %p237
      %p240 = scmp.ne.s32.totalorder %s225, %s239
      %p241 = scmp.eq.s32.totalorder %s26, 0
      %p242 = por %p240, %p241
      %s244 = sadd.s32 %s243, 1
      %p247 = scmp.eq.s32.totalorder %s20, 1
      %p248 = scmp.ne.s32.totalorder %s243, %s245
      %p249 = scmp.eq.s32.totalorder %s20, 0
      %p250 = por %p248, %p249
      %p251 = scmp.ne.s32.totalorder %s243, %s245
      %p252 = scmp.eq.s32.totalorder %s25, 1
      %p253 = por %p251, %p252
      %p254 = scmp.ne.s32.totalorder %s245, %s246
      %p255 = scmp.eq.s32.totalorder %s25, 0
      %p256 = por %p254, %p255
      %p257 = scmp.ne.s32.totalorder %s245, %s246
      %p258 = scmp.eq.s32.totalorder %s26, 1
      %p259 = por %p257, %p258
      %p261 = scmp.ne.s32.totalorder %s246, %s260
      %p262 = scmp.eq.s32.totalorder %s26, 0
      %p263 = por %p261, %p262
      %s264 = ssub.s32 %s20, %s27
      %p265 = scmp.eq.s32.totalorder %s264, 0
      %s267 = sadd.s32 %s266, 1
      %s268 = scalar_select %p265, %s266, %s267
      %p271 = pneg %p265
      %p272 = scmp.eq.s32.totalorder %s20, 1
      %p273 = por %p271, %p272
      %p274 = scmp.ne.s32.totalorder %s266, %s269
      %p275 = scmp.eq.s32.totalorder %s20, 0
      %p276 = por %p274, %p275
      %p277 = scmp.ne.s32.totalorder %s266, %s269
      %p278 = scmp.eq.s32.totalorder %s25, 1
      %p279 = por %p277, %p278
      %p280 = scmp.ne.s32.totalorder %s269, %s270
      %p281 = scmp.eq.s32.totalorder %s25, 0
      %p282 = por %p280, %p281
      %p283 = scmp.ne.s32.totalorder %s269, %s270
      %p284 = scmp.eq.s32.totalorder %s26, 1
      %p285 = por %p283, %p284
      %p287 = scmp.ne.s32.totalorder %s270, %s286
      %p288 = scmp.eq.s32.totalorder %s26, 0
      %p289 = por %p287, %p288
      %p290 = scmp.le.s32.totalorder 1, %s20
      %p291 = scmp.lt.s32.totalorder %s20, 3
      %p292 = pnand %p290, %p291
      %p293 = pneg %p292
      // Predicated region
      $region9: #{tpu_custom_call.1} parent=5 // pred_check
        _
      $region10: #{tpu_custom_call.1} parent=5 // pred_check_branch
        %295 = sbr.rel (%p292) target = $region12
      $region11: #{tpu_custom_call.1} parent=5 // pred_region
        %s296 = ssub.s32 %s20, 1
        // Predicated region
        $region13: #{tpu_custom_call.1} parent=11 // pred_check
          %p297 = pneg %p67
        $region14: #{tpu_custom_call.1} parent=11 // pred_check_branch
          %299 = sbr.rel (%p297) target = $region16
        $region15: #{tpu_custom_call.1} parent=11 // pred_region
          _
        $region16: #{tpu_custom_call.1} parent=11 // pred_fallthru
          _
        // Predicated region
        $region17: #{tpu_custom_call.1} parent=11 // pred_check
          %p300 = pneg %p88
        $region18: #{tpu_custom_call.1} parent=11 // pred_check_branch
          %302 = sbr.rel (%p300) target = $region20
        $region19: #{tpu_custom_call.1} parent=11 // pred_region
          _
        $region20: #{tpu_custom_call.1} parent=11 // pred_fallthru
          _
        // Predicated region
        $region21: #{tpu_custom_call.1} parent=11 // pred_check
          %p303 = pneg %p109
        $region22: #{tpu_custom_call.1} parent=11 // pred_check_branch
          %305 = sbr.rel (%p303) target = $region24
        $region23: #{tpu_custom_call.1} parent=11 // pred_region
          _
        $region24: #{tpu_custom_call.1} parent=11 // pred_fallthru
          _
        // Predicated region
        $region25: #{tpu_custom_call.1} parent=11 // pred_check
          %p306 = pneg %p130
        $region26: #{tpu_custom_call.1} parent=11 // pred_check_branch
          %308 = sbr.rel (%p306) target = $region28
        $region27: #{tpu_custom_call.1} parent=11 // pred_region
          _
        $region28: #{tpu_custom_call.1} parent=11 // pred_fallthru
          _
        // Predicated region
        $region29: #{tpu_custom_call.1} parent=11 // pred_check
          %p309 = pneg %p151
        $region30: #{tpu_custom_call.1} parent=11 // pred_check_branch
          %311 = sbr.rel (%p309) target = $region32
        $region31: #{tpu_custom_call.1} parent=11 // pred_region
          _
        $region32: #{tpu_custom_call.1} parent=11 // pred_fallthru
          _
        // Predicated region
        $region33: #{tpu_custom_call.1} parent=11 // pred_check
          %p312 = pneg %p172
        $region34: #{tpu_custom_call.1} parent=11 // pred_check_branch
          %314 = sbr.rel (%p312) target = $region36
        $region35: #{tpu_custom_call.1} parent=11 // pred_region
          _
        $region36: #{tpu_custom_call.1} parent=11 // pred_fallthru
          _
        // Predicated region
        $region37: #{tpu_custom_call.1} parent=11 // pred_check
          %p315 = pneg %p193
        $region38: #{tpu_custom_call.1} parent=11 // pred_check_branch
          %317 = sbr.rel (%p315) target = $region40
        $region39: #{tpu_custom_call.1} parent=11 // pred_region
          _
        $region40: #{tpu_custom_call.1} parent=11 // pred_fallthru
          _
        // Predicated region
        $region41: #{tpu_custom_call.1} parent=11 // pred_check
          %p318 = pneg %p214
        $region42: #{tpu_custom_call.1} parent=11 // pred_check_branch
          %320 = sbr.rel (%p318) target = $region44
        $region43: #{tpu_custom_call.1} parent=11 // pred_region
          _
        $region44: #{tpu_custom_call.1} parent=11 // pred_fallthru
          _
        // Predicated region
        $region45: #{tpu_custom_call.1} parent=11 // pred_check
          %p321 = pneg %p235
        $region46: #{tpu_custom_call.1} parent=11 // pred_check_branch
          %323 = sbr.rel (%p321) target = $region48
        $region47: #{tpu_custom_call.1} parent=11 // pred_region
          _
        $region48: #{tpu_custom_call.1} parent=11 // pred_fallthru
          _
        // Predicated region
        $region49: #{tpu_custom_call.1} parent=11 // pred_check
          %p324 = pneg %p256
        $region50: #{tpu_custom_call.1} parent=11 // pred_check_branch
          %326 = sbr.rel (%p324) target = $region52
        $region51: #{tpu_custom_call.1} parent=11 // pred_region
          _
        $region52: #{tpu_custom_call.1} parent=11 // pred_fallthru
          _
      $region12: #{tpu_custom_call.1} parent=5 // pred_fallthru
        _
      %p327 = scmp.lt.s32.totalorder %s20, 2
      // Predicated region
      $region53: #{tpu_custom_call.1} parent=5 // pred_check
        %p328 = pneg %p327
      $region54: #{tpu_custom_call.1} parent=5 // pred_check_branch
        %330 = sbr.rel (%p328) target = $region56
      $region55: #{tpu_custom_call.1} parent=5 // pred_region
        // Predicated region
        $region57: #{tpu_custom_call.1} parent=55 // pred_check
          %p331 = pneg %p40
        $region58: #{tpu_custom_call.1} parent=55 // pred_check_branch
          %333 = sbr.rel (%p331) target = $region60
        $region59: #{tpu_custom_call.1} parent=55 // pred_region
          %s334 = sand.u32 %s30, 1
          %s335 = scalar_lea.sflag [#allocation3], %s334
          %s336 = sand.u32 %s30, 1
          %s337 = smul.addr %s336, 192
          %s338 = scalar_lea.vmem [#allocation2], %s337
          %s339 = smul.u32 2, %s20
          %s341 = ssub.s32 3072, 3072
          %342 = vsyncadd %s335, %s341
          %s343 = smul.addr %s339, 24
          %s344 = smul.addr %s343, 64
          %s345 = scalar_lea.hbm %s0, %s344
          %s346 = sshll.u32 %s338, 4
          %s347 = int_to_ptr.vmem [resolvable:$true] %s346
          %352 = dma.hbm_to_vmem [thread:$0]  %s345, 3072, %s347, %s335, 192, 192, 12
        $region60: #{tpu_custom_call.1} parent=55 // pred_fallthru
          _
      $region56: #{tpu_custom_call.1} parent=5 // pred_fallthru
        _
      %p353 = scmp.le.s32.totalorder 1, %s20
      %p354 = scmp.lt.s32.totalorder %s20, 3
      %p355 = pnand %p353, %p354
      %p356 = pneg %p355
      // Predicated region
      $region61: #{tpu_custom_call.1} parent=5 // pred_check
        _
      $region62: #{tpu_custom_call.1} parent=5 // pred_check_branch
        %358 = sbr.rel (%p355) target = $region64
      $region63: #{tpu_custom_call.1} parent=5 // pred_region
        %s359 = ssub.s32 %s20, 1
        %s360 = sand.u32 %s33, 1
        %s361 = scalar_lea.sflag [#allocation3], %s360
        %s362 = sand.u32 %s33, 1
        %s363 = smul.addr %s362, 192
        %s364 = scalar_lea.vmem [#allocation2], %s363
        // Predicated region
        $region65: #{tpu_custom_call.1} parent=63 // pred_check
          %p365 = pneg %p46
        $region66: #{tpu_custom_call.1} parent=63 // pred_check_branch
          %367 = sbr.rel (%p365) target = $region68
        $region67: #{tpu_custom_call.1} parent=63 // pred_region
          %368 = dma.done %s361, 3072
        $region68: #{tpu_custom_call.1} parent=63 // pred_fallthru
          _
        %s369 = sand.u32 %s33, 1
        %s370 = scalar_lea.sflag [#allocation3], %s369
        %s371 = sand.u32 %s33, 1
        %s372 = smul.addr %s371, 192
        %s373 = scalar_lea.vmem [#allocation2], %s372
        %p374 = pneg %p46
        %p375 = pneg %p43
        %p376 = pneg %p67
        %p377 = pneg %p64
        %p378 = pneg %p88
        %p379 = pneg %p85
        %p380 = pneg %p109
        %p381 = pneg %p106
        %p382 = pneg %p130
        %p383 = pneg %p127
        %p384 = pneg %p151
        %p385 = pneg %p148
        %p386 = pneg %p172
        %p387 = pneg %p169
        %p388 = pneg %p193
        %p389 = pneg %p190
        %p390 = pneg %p214
        %p391 = pneg %p211
        %p392 = pneg %p235
        %p393 = pneg %p232
        %p394 = pneg %p256
        %p395 = pneg %p253
        %p396 = pneg %p282
        %p397 = pneg %p279
        %s398 = smul.u32 2, %s25
        %p399 = scmp.lt.s32.totalorder %s398, 3
        %s400 = scalar_select %p399, %s398, 3
        %s401 = smul.addr %s400, 8
        %s402 = smul.addr %s401, 8
        %s403 = scalar_lea.vmem %s11, %s402
        %s404 = smul.u32 2, %s25
        %s405 = smul.u32 2, %s25
        %p406 = scmp.lt.s32.totalorder %s405, 3
        %s407 = scalar_select %p406, %s405, 3
        %s408 = smul.addr %s407, 8
        %s409 = smul.addr %s408, 8
        %s410 = scalar_lea.vmem %s11, %s409
        %s411 = smul.u32 2, %s25
        %v413 = vld [vmem:[%s364] sm:$0xff]
        %v414 = vld [vmem:[%s364 + $0x8] sm:$0xf]
        %v415 = vld [vmem:[%s364 + $0xc] sm:$0xff]
        %v416 = vld [vmem:[%s364 + $0x14] sm:$0xf]
        %v417 = vld [vmem:[%s364 + $0x18] sm:$0xff]
        %v418 = vld [vmem:[%s364 + $0x20] sm:$0xf]
        %v419 = vld [vmem:[%s364 + $0x24] sm:$0xff]
        %v420 = vld [vmem:[%s364 + $0x2c] sm:$0xf]
        %v421 = vld [vmem:[%s364 + $0x30] sm:$0xff]
        %v422 = vld [vmem:[%s364 + $0x38] sm:$0xf]
        %v423 = vld [vmem:[%s364 + $0x3c] sm:$0xff]
        %v424 = vld [vmem:[%s364 + $0x44] sm:$0xf]
        %v425 = vld [vmem:[%s364 + $0x48] sm:$0xff]
        %v426 = vld [vmem:[%s364 + $0x50] sm:$0xf]
        %v427 = vld [vmem:[%s364 + $0x54] sm:$0xff]
        %v428 = vld [vmem:[%s364 + $0x5c] sm:$0xf]
        %v429 = vld [vmem:[%s364 + $0x60] sm:$0xff]
        %v430 = vld [vmem:[%s364 + $0x68] sm:$0xf]
        %v431 = vld [vmem:[%s364 + $0x6c] sm:$0xff]
        %v432 = vld [vmem:[%s364 + $0x74] sm:$0xf]
        %v433 = vld [vmem:[%s364 + $0x78] sm:$0xff]
        %v434 = vld [vmem:[%s364 + $0x80] sm:$0xf]
        %v435 = vld [vmem:[%s364 + $0x84] sm:$0xff]
        %v436 = vld [vmem:[%s364 + $0x8c] sm:$0xf]
        %v437 = vld [vmem:[%s364 + $0x90] sm:$0xff]
        %v438 = vld [vmem:[%s364 + $0x98] sm:$0xf]
        %v439 = vld [vmem:[%s364 + $0x9c] sm:$0xff]
        %v440 = vld [vmem:[%s364 + $0xa4] sm:$0xf]
        %v441 = vld [vmem:[%s364 + $0xa8] sm:$0xff]
        %v442 = vld [vmem:[%s364 + $0xb0] sm:$0xf]
        %v443 = vld [vmem:[%s364 + $0xb4] sm:$0xff]
        %v444 = vld [vmem:[%s364 + $0xbc] sm:$0xf]
        %v445 = vld [vmem:[%s1] sm:$0xf]
        %v446 = vld [vmem:[%s1 + $0x4] sm:$0xf]
        %v447 = vld [vmem:[%s1 + $0x8] sm:$0xf]
        %v448 = vld [vmem:[%s1 + $0xc] sm:$0xf]
        %v449 = vld [vmem:[%s1 + $0x10] sm:$0xf]
        %v450 = vld [vmem:[%s1 + $0x14] sm:$0xf]
        %v451 = vld [vmem:[%s1 + $0x18] sm:$0xf]
        %v452 = vld [vmem:[%s1 + $0x1c] sm:$0xf]
        %v453 = vld [vmem:[%s1 + $0x20] sm:$0xf]
        %v454 = vld [vmem:[%s1 + $0x24] sm:$0xf]
        %v455 = vld [vmem:[%s1 + $0x28] sm:$0xf]
        %v456 = vld [vmem:[%s1 + $0x2c] sm:$0xf]
        %v457 = vld [vmem:[%s1 + $0x30] sm:$0xf]
        %v458 = vld [vmem:[%s1 + $0x34] sm:$0xf]
        %v459 = vld [vmem:[%s1 + $0x38] sm:$0xf]
        %v460 = vld [vmem:[%s1 + $0x3c] sm:$0xf]
        %v461 = vld [vmem:[%s1 + $0x40] sm:$0xf]
        %v462 = vld [vmem:[%s1 + $0x44] sm:$0xf]
        %v463 = vld [vmem:[%s1 + $0x48] sm:$0xf]
        %v464 = vld [vmem:[%s1 + $0x4c] sm:$0xf]
        %v465 = vld [vmem:[%s1 + $0x50] sm:$0xf]
        %v466 = vld [vmem:[%s1 + $0x54] sm:$0xf]
        %v467 = vld [vmem:[%s1 + $0x58] sm:$0xf]
        %v468 = vld [vmem:[%s1 + $0x5c] sm:$0xf]
        %v469 = vld [vmem:[%s1 + $0x60] sm:$0xf]
        %v470 = vld [vmem:[%s1 + $0x64] sm:$0xf]
        %v471 = vld [vmem:[%s1 + $0x68] sm:$0xf]
        %v472 = vld [vmem:[%s1 + $0x6c] sm:$0xf]
        %v473 = vld [vmem:[%s1 + $0x70] sm:$0xf]
        %v474 = vld [vmem:[%s1 + $0x74] sm:$0xf]
        %v475 = vld [vmem:[%s1 + $0x78] sm:$0xf]
        %v476 = vld [vmem:[%s1 + $0x7c] sm:$0xf]
        %v477 = vld [vmem:[%s1 + $0x80] sm:$0xf]
        %v478 = vld [vmem:[%s1 + $0x84] sm:$0xf]
        %v479 = vld [vmem:[%s1 + $0x88] sm:$0xf]
        %v480 = vld [vmem:[%s1 + $0x8c] sm:$0xf]
        %v481 = vld [vmem:[%s2] sm:$0x1]
        %v483 = vlaneseq
        %v484 = vshrl.u32 %v483, 7
        %v485 = vsub.s32 0, %v484
        %v486 = vrot.slane %v481, %v485
        %v520 = vunpack.c.l.b16 %v413
        %v521 = vunpack.c.h.b16 %v413
        %v522 = vunpack.c.l.b16 %v414
        %v523 = vunpack.c.l.b16 %v415
        %v524 = vunpack.c.h.b16 %v415
        %v525 = vunpack.c.l.b16 %v416
        %v526 = vunpack.c.l.b16 %v417
        %v527 = vunpack.c.h.b16 %v417
        %v528 = vunpack.c.l.b16 %v418
        %v529 = vunpack.c.l.b16 %v419
        %v530 = vunpack.c.h.b16 %v419
        %v531 = vunpack.c.l.b16 %v420
        %v532 = vunpack.c.l.b16 %v421
        %v533 = vunpack.c.h.b16 %v421
        %v534 = vunpack.c.l.b16 %v422
        %v535 = vunpack.c.l.b16 %v423
        %v536 = vunpack.c.h.b16 %v423
        %v537 = vunpack.c.l.b16 %v424
        %v538 = vunpack.c.l.b16 %v425
        %v539 = vunpack.c.h.b16 %v425
        %v540 = vunpack.c.l.b16 %v426
        %v541 = vunpack.c.l.b16 %v427
        %v542 = vunpack.c.h.b16 %v427
        %v543 = vunpack.c.l.b16 %v428
        %v544 = vunpack.c.l.b16 %v429
        %v545 = vunpack.c.h.b16 %v429
        %v546 = vunpack.c.l.b16 %v430
        %v547 = vunpack.c.l.b16 %v431
        %v548 = vunpack.c.h.b16 %v431
        %v549 = vunpack.c.l.b16 %v432
        %v550 = vunpack.c.l.b16 %v433
        %v551 = vunpack.c.h.b16 %v433
        %v552 = vunpack.c.l.b16 %v434
        %v553 = vunpack.c.l.b16 %v435
        %v554 = vunpack.c.h.b16 %v435
        %v555 = vunpack.c.l.b16 %v436
        %v556 = vunpack.c.l.b16 %v437
        %v557 = vunpack.c.h.b16 %v437
        %v558 = vunpack.c.l.b16 %v438
        %v559 = vunpack.c.l.b16 %v439
        %v560 = vunpack.c.h.b16 %v439
        %v561 = vunpack.c.l.b16 %v440
        %v562 = vunpack.c.l.b16 %v441
        %v563 = vunpack.c.h.b16 %v441
        %v564 = vunpack.c.l.b16 %v442
        %v565 = vunpack.c.l.b16 %v443
        %v566 = vunpack.c.h.b16 %v443
        %v567 = vunpack.c.l.b16 %v444
        %v568 = vpack.c.b16 %v523, %v520
        %v569 = vpack.c.b16 %v524, %v521
        %v570 = vpack.c.b16 %v525, %v522
        %v571 = vpack.c.b16 %v529, %v526
        %v572 = vpack.c.b16 %v530, %v527
        %v573 = vpack.c.b16 %v531, %v528
        %v574 = vpack.c.b16 %v535, %v532
        %v575 = vpack.c.b16 %v536, %v533
        %v576 = vpack.c.b16 %v537, %v534
        %v577 = vpack.c.b16 %v541, %v538
        %v578 = vpack.c.b16 %v542, %v539
        %v579 = vpack.c.b16 %v543, %v540
        %v580 = vpack.c.b16 %v547, %v544
        %v581 = vpack.c.b16 %v548, %v545
        %v582 = vpack.c.b16 %v549, %v546
        %v583 = vpack.c.b16 %v553, %v550
        %v584 = vpack.c.b16 %v554, %v551
        %v585 = vpack.c.b16 %v555, %v552
        %v586 = vpack.c.b16 %v559, %v556
        %v587 = vpack.c.b16 %v560, %v557
        %v588 = vpack.c.b16 %v561, %v558
        %v589 = vpack.c.b16 %v565, %v562
        %v590 = vpack.c.b16 %v566, %v563
        %v591 = vpack.c.b16 %v567, %v564
        %v644 = vunpack.c.l.b16 %v445
        %v645 = vunpack.c.l.b16 %v446
        %v646 = vunpack.c.l.b16 %v447
        %v647 = vunpack.c.l.b16 %v448
        %v648 = vunpack.c.l.b16 %v449
        %v649 = vunpack.c.l.b16 %v450
        %v650 = vunpack.c.l.b16 %v451
        %v651 = vunpack.c.l.b16 %v452
        %v652 = vunpack.c.l.b16 %v453
        %v653 = vunpack.c.l.b16 %v454
        %v654 = vunpack.c.l.b16 %v455
        %v655 = vunpack.c.l.b16 %v456
        %v656 = vunpack.c.l.b16 %v457
        %v657 = vunpack.c.l.b16 %v458
        %v658 = vunpack.c.l.b16 %v459
        %v659 = vunpack.c.l.b16 %v460
        %v660 = vunpack.c.l.b16 %v461
        %v661 = vunpack.c.l.b16 %v462
        %v662 = vunpack.c.l.b16 %v463
        %v663 = vunpack.c.l.b16 %v464
        %v664 = vunpack.c.l.b16 %v465
        %v665 = vunpack.c.l.b16 %v466
        %v666 = vunpack.c.l.b16 %v467
        %v667 = vunpack.c.l.b16 %v468
        %v668 = vunpack.c.l.b16 %v469
        %v669 = vunpack.c.l.b16 %v470
        %v670 = vunpack.c.l.b16 %v471
        %v671 = vunpack.c.l.b16 %v472
        %v672 = vunpack.c.l.b16 %v473
        %v673 = vunpack.c.l.b16 %v474
        %v674 = vunpack.c.l.b16 %v475
        %v675 = vunpack.c.l.b16 %v476
        %v676 = vunpack.c.l.b16 %v477
        %v677 = vunpack.c.l.b16 %v478
        %v678 = vunpack.c.l.b16 %v479
        %v679 = vunpack.c.l.b16 %v480
        %v680 = vpack.c.b16 %v645, %v644
        %v681 = vpack.c.b16 %v647, %v646
        %v682 = vpack.c.b16 %v649, %v648
        %v683 = vpack.c.b16 %v651, %v650
        %v684 = vpack.c.b16 %v653, %v652
        %v685 = vpack.c.b16 %v655, %v654
        %v686 = vpack.c.b16 %v657, %v656
        %v687 = vpack.c.b16 %v659, %v658
        %v688 = vpack.c.b16 %v661, %v660
        %v689 = vpack.c.b16 %v663, %v662
        %v690 = vpack.c.b16 %v665, %v664
        %v691 = vpack.c.b16 %v667, %v666
        %v692 = vpack.c.b16 %v669, %v668
        %v693 = vpack.c.b16 %v671, %v670
        %v694 = vpack.c.b16 %v673, %v672
        %v695 = vpack.c.b16 %v675, %v674
        %v696 = vpack.c.b16 %v677, %v676
        %v697 = vpack.c.b16 %v679, %v678
        %vm716 = vcmask 261120
        %v718 = vsel %vm716, %v570, 0
        %v721 = vsel %vm716, %v573, 0
        %v724 = vsel %vm716, %v576, 0
        %v727 = vsel %vm716, %v579, 0
        %v730 = vsel %vm716, %v582, 0
        %v733 = vsel %vm716, %v585, 0
        %v736 = vsel %vm716, %v588, 0
        %v739 = vsel %vm716, %v591, 0
        %741 = vmatprep.subr.bf16.mxu0 0
        %742 = vmatpush1.bf16.msra.mxu0 %v680
        %743 = vmatprep.subr.bf16.mxu0 0
        %744 = vmatpush1.bf16.msra.mxu0 %v681
        %745 = vmatprep.subr.bf16.mxu0 0
        %746 = vmatpush1.bf16.msra.mxu0 %v682
        %747 = vmatprep.subr.bf16.mxu0 0
        %748 = vmatpush1.bf16.msra.mxu0 %v683
        %749 = vmatprep.subr.bf16.mxu0 0
        %750 = vmatpush1.bf16.msra.mxu0 %v684
        %751 = vmatprep.subr.bf16.mxu0 0
        %752 = vmatpush1.bf16.msra.mxu0 %v685
        %753 = vmatprep.subr.bf16.mxu0 0
        %754 = vmatpush1.bf16.msra.mxu0 %v686
        %755 = vmatprep.subr.bf16.mxu0 0
        %756 = vmatpush1.bf16.msra.mxu0 %v687
        %757 = vmatprep.subr.bf16.mxu0 0
        %758 = vmatpush1.bf16.msra.mxu0 %v688
        %759 = vmatprep.subr.bf16.mxu0 0
        %760 = vmatpush1.bf16.msra.mxu0 %v689
        %761 = vmatprep.subr.bf16.mxu0 0
        %762 = vmatpush1.bf16.msra.mxu0 %v690
        %763 = vmatprep.subr.bf16.mxu0 0
        %764 = vmatpush1.bf16.msra.mxu0 %v691
        %765 = vmatprep.subr.bf16.mxu0 0
        %766 = vmatpush1.bf16.msra.mxu0 %v692
        %767 = vmatprep.subr.bf16.mxu0 0
        %768 = vmatpush1.bf16.msra.mxu0 %v693
        %769 = vmatprep.subr.bf16.mxu0 0
        %770 = vmatpush1.bf16.msra.mxu0 %v694
        %771 = vmatprep.subr.bf16.mxu0 0
        %772 = vmatpush1.bf16.msra.mxu0 %v695
        %773 = vmatprep.mubr.bf16.mxu0 %v569
        %774 = vmatmul.mubr.bf16.gmra.mrb[0].mxu0 %v568
        %v775 = vpop.f32.mrb[0].mxu0
        %v776 = vadd.f32 %v486, %v775
        %v777 = vpop.f32.mrb[0].mxu0
        %v778 = vpop.f32.mrb[0].mxu0
        %v779 = vadd.f32 %v486, %v778
        %v780 = vpop.f32.mrb[0].mxu0
        %781 = vmatprep.mubr.bf16.mxu0 %v572
        %782 = vmatmul.mubr.bf16.gmra.mrb[0].mxu0 %v571
        %v783 = vpop.f32.mrb[0].mxu0
        %v784 = vadd.f32 %v486, %v783
        %v785 = vpop.f32.mrb[0].mxu0
        %v786 = vpop.f32.mrb[0].mxu0
        %v787 = vadd.f32 %v486, %v786
        %v788 = vpop.f32.mrb[0].mxu0
        %789 = vmatprep.mubr.bf16.mxu0 %v575
        %790 = vmatmul.mubr.bf16.gmra.mrb[0].mxu0 %v574
        %v791 = vpop.f32.mrb[0].mxu0
        %v792 = vadd.f32 %v486, %v791
        %v793 = vpop.f32.mrb[0].mxu0
        %v794 = vpop.f32.mrb[0].mxu0
        %v795 = vadd.f32 %v486, %v794
        %v796 = vpop.f32.mrb[0].mxu0
        %797 = vmatprep.mubr.bf16.mxu0 %v578
        %798 = vmatmul.mubr.bf16.gmra.mrb[0].mxu0 %v577
        %v799 = vpop.f32.mrb[0].mxu0
        %v800 = vadd.f32 %v486, %v799
        %v801 = vpop.f32.mrb[0].mxu0
        %v802 = vpop.f32.mrb[0].mxu0
        %v803 = vadd.f32 %v486, %v802
        %v804 = vpop.f32.mrb[0].mxu0
        %805 = vmatprep.mubr.bf16.mxu0 %v581
        %806 = vmatmul.mubr.bf16.gmra.mrb[0].mxu0 %v580
        %v807 = vpop.f32.mrb[0].mxu0
        %v808 = vadd.f32 %v486, %v807
        %v809 = vpop.f32.mrb[0].mxu0
        %v810 = vpop.f32.mrb[0].mxu0
        %v811 = vadd.f32 %v486, %v810
        %v812 = vpop.f32.mrb[0].mxu0
        %813 = vmatprep.mubr.bf16.mxu0 %v584
        %814 = vmatmul.mubr.bf16.gmra.mrb[0].mxu0 %v583
        %v815 = vpop.f32.mrb[0].mxu0
        %v816 = vadd.f32 %v486, %v815
        %v817 = vpop.f32.mrb[0].mxu0
        %v818 = vpop.f32.mrb[0].mxu0
        %v819 = vadd.f32 %v486, %v818
        %v820 = vpop.f32.mrb[0].mxu0
        %821 = vmatprep.mubr.bf16.mxu0 %v587
        %822 = vmatmul.mubr.bf16.gmra.mrb[0].mxu0 %v586
        %v823 = vpop.f32.mrb[0].mxu0
        %v824 = vadd.f32 %v486, %v823
        %v825 = vpop.f32.mrb[0].mxu0
        %v826 = vpop.f32.mrb[0].mxu0
        %v827 = vadd.f32 %v486, %v826
        %v828 = vpop.f32.mrb[0].mxu0
        %829 = vmatprep.mubr.bf16.mxu0 %v590
        %830 = vmatmul.mubr.bf16.gmra.mrb[0].mxu0 %v589
        %v831 = vpop.f32.mrb[0].mxu0
        %v832 = vadd.f32 %v486, %v831
        %v833 = vpop.f32.mrb[0].mxu0
        %v834 = vpop.f32.mrb[0].mxu0
        %v835 = vadd.f32 %v486, %v834
        %v836 = vpop.f32.mrb[0].mxu0
        %837 = vdwg.mxu0
        %838 = vmatprep.subr.bf16.mxu0 0
        %839 = vmatpush1.bf16.msra.mxu0 %v696
        %840 = vmatprep.subr.bf16.mxu0 0
        %841 = vmatpush1.bf16.msra.mxu0 %v697
        %842 = vmatprep.subr.bf16.mxu0 0
        %843 = vmatpush1.bf16.msra.mxu0 0
        %844 = vmatprep.subr.bf16.mxu0 0
        %845 = vmatpush1.bf16.msra.mxu0 0
        %846 = vmatprep.subr.bf16.mxu0 0
        %847 = vmatpush1.bf16.msra.mxu0 0
        %848 = vmatprep.subr.bf16.mxu0 0
        %849 = vmatpush1.bf16.msra.mxu0 0
        %850 = vmatprep.subr.bf16.mxu0 0
        %851 = vmatpush1.bf16.msra.mxu0 0
        %852 = vmatprep.subr.bf16.mxu0 0
        %853 = vmatpush1.bf16.msra.mxu0 0
        %854 = vmatprep.subr.bf16.mxu0 0
        %855 = vmatpush1.bf16.msra.mxu0 0
        %856 = vmatprep.subr.bf16.mxu0 0
        %857 = vmatpush1.bf16.msra.mxu0 0
        %858 = vmatprep.subr.bf16.mxu0 0
        %859 = vmatpush1.bf16.msra.mxu0 0
        %860 = vmatprep.subr.bf16.mxu0 0
        %861 = vmatpush1.bf16.msra.mxu0 0
        %862 = vmatprep.subr.bf16.mxu0 0
        %863 = vmatpush1.bf16.msra.mxu0 0
        %864 = vmatprep.subr.bf16.mxu0 0
        %865 = vmatpush1.bf16.msra.mxu0 0
        %866 = vmatprep.subr.bf16.mxu0 0
        %867 = vmatpush1.bf16.msra.mxu0 0
        %868 = vmatprep.subr.bf16.mxu0 0
        %869 = vmatpush1.bf16.msra.mxu0 0
        %870 = vmatprep.mubr.bf16.mxu0 0
        %871 = vmatmul.mubr.bf16.gmra.mrb[0].mxu0 %v718
        %v872 = vpop.f32.mrb[0].mxu0
        %v873 = vadd.f32 %v776, %v872
        %v874 = vpop.f32.mrb[0].mxu0
        %v875 = vpop.f32.mrb[0].mxu0
        %v876 = vadd.f32 %v779, %v875
        %v877 = vpop.f32.mrb[0].mxu0
        %878 = vmatprep.mubr.bf16.mxu0 0
        %879 = vmatmul.mubr.bf16.gmra.mrb[0].mxu0 %v721
        %v880 = vpop.f32.mrb[0].mxu0
        %v881 = vadd.f32 %v784, %v880
        %v882 = vpop.f32.mrb[0].mxu0
        %v883 = vpop.f32.mrb[0].mxu0
        %v884 = vadd.f32 %v787, %v883
        %v885 = vpop.f32.mrb[0].mxu0
        %886 = vmatprep.mubr.bf16.mxu0 0
        %887 = vmatmul.mubr.bf16.gmra.mrb[0].mxu0 %v724
        %v888 = vpop.f32.mrb[0].mxu0
        %v889 = vadd.f32 %v792, %v888
        %v890 = vpop.f32.mrb[0].mxu0
        %v891 = vpop.f32.mrb[0].mxu0
        %v892 = vadd.f32 %v795, %v891
        %v893 = vpop.f32.mrb[0].mxu0
        %894 = vmatprep.mubr.bf16.mxu0 0
        %895 = vmatmul.mubr.bf16.gmra.mrb[0].mxu0 %v727
        %v896 = vpop.f32.mrb[0].mxu0
        %v897 = vadd.f32 %v800, %v896
        %v898 = vpop.f32.mrb[0].mxu0
        %v899 = vpop.f32.mrb[0].mxu0
        %v900 = vadd.f32 %v803, %v899
        %v901 = vpop.f32.mrb[0].mxu0
        %902 = vmatprep.mubr.bf16.mxu0 0
        %903 = vmatmul.mubr.bf16.gmra.mrb[0].mxu0 %v730
        %v904 = vpop.f32.mrb[0].mxu0
        %v905 = vadd.f32 %v808, %v904
        %v906 = vpop.f32.mrb[0].mxu0
        %v907 = vpop.f32.mrb[0].mxu0
        %v908 = vadd.f32 %v811, %v907
        %v909 = vpop.f32.mrb[0].mxu0
        %910 = vmatprep.mubr.bf16.mxu0 0
        %911 = vmatmul.mubr.bf16.gmra.mrb[0].mxu0 %v733
        %v912 = vpop.f32.mrb[0].mxu0
        %v913 = vadd.f32 %v816, %v912
        %v914 = vpop.f32.mrb[0].mxu0
        %v915 = vpop.f32.mrb[0].mxu0
        %v916 = vadd.f32 %v819, %v915
        %v917 = vpop.f32.mrb[0].mxu0
        %918 = vmatprep.mubr.bf16.mxu0 0
        %919 = vmatmul.mubr.bf16.gmra.mrb[0].mxu0 %v736
        %v920 = vpop.f32.mrb[0].mxu0
        %v921 = vadd.f32 %v824, %v920
        %v922 = vpop.f32.mrb[0].mxu0
        %v923 = vpop.f32.mrb[0].mxu0
        %v924 = vadd.f32 %v827, %v923
        %v925 = vpop.f32.mrb[0].mxu0
        %926 = vmatprep.mubr.bf16.mxu0 0
        %927 = vmatmul.mubr.bf16.gmra.mrb[0].mxu0 %v739
        %v928 = vpop.f32.mrb[0].mxu0
        %v929 = vadd.f32 %v832, %v928
        %v930 = vpop.f32.mrb[0].mxu0
        %v931 = vpop.f32.mrb[0].mxu0
        %v932 = vadd.f32 %v835, %v931
        %v933 = vpop.f32.mrb[0].mxu0
        %934 = vdwg.mxu0
        %v935 = vpack.c.bf16 %v876, %v873
        %v936 = vpack.c.bf16 %v884, %v881
        %v937 = vpack.c.bf16 %v892, %v889
        %v938 = vpack.c.bf16 %v900, %v897
        %v939 = vpack.c.bf16 %v908, %v905
        %v940 = vpack.c.bf16 %v916, %v913
        %v941 = vpack.c.bf16 %v924, %v921
        %v942 = vpack.c.bf16 %v932, %v929
        %v943 = vld [vmem:[%s3] sm:$0xf]
        %v944 = vld [vmem:[%s3 + $0x4] sm:$0xf]
        %v945 = vld [vmem:[%s3 + $0x8] sm:$0xf]
        %v946 = vld [vmem:[%s3 + $0xc] sm:$0xf]
        %v947 = vld [vmem:[%s4] sm:$0x1]
        %v949 = vlaneseq
        %v950 = vshrl.u32 %v949, 7
        %v951 = vsub.s32 0, %v950
        %v952 = vrot.slane %v947, %v951
        %v958 = vunpack.c.l.b16 %v943
        %v959 = vunpack.c.l.b16 %v944
        %v960 = vunpack.c.l.b16 %v945
        %v961 = vunpack.c.l.b16 %v946
        %v962 = vpack.c.b16 %v959, %v958
        %v963 = vpack.c.b16 %v961, %v960
        %v967 = vsel %vm716, %v935, 0
        %v970 = vsel %vm716, %v936, 0
        %v973 = vsel %vm716, %v937, 0
        %v976 = vsel %vm716, %v938, 0
        %v979 = vsel %vm716, %v939, 0
        %v982 = vsel %vm716, %v940, 0
        %v985 = vsel %vm716, %v941, 0
        %v988 = vsel %vm716, %v942, 0
        %990 = vmatprep.subr.bf16.mxu0 0
        %991 = vmatpush1.bf16.msra.mxu0 %v962
        %992 = vmatprep.subr.bf16.mxu0 0
        %993 = vmatpush1.bf16.msra.mxu0 %v963
        %994 = vmatprep.subr.bf16.mxu0 0
        %995 = vmatpush1.bf16.msra.mxu0 0
        %996 = vmatprep.subr.bf16.mxu0 0
        %997 = vmatpush1.bf16.msra.mxu0 0
        %998 = vmatprep.subr.bf16.mxu0 0
        %999 = vmatpush1.bf16.msra.mxu0 0
        %1000 = vmatprep.subr.bf16.mxu0 0
        %1001 = vmatpush1.bf16.msra.mxu0 0
        %1002 = vmatprep.subr.bf16.mxu0 0
        %1003 = vmatpush1.bf16.msra.mxu0 0
        %1004 = vmatprep.subr.bf16.mxu0 0
        %1005 = vmatpush1.bf16.msra.mxu0 0
        %1006 = vmatprep.subr.bf16.mxu0 0
        %1007 = vmatpush1.bf16.msra.mxu0 0
        %1008 = vmatprep.subr.bf16.mxu0 0
        %1009 = vmatpush1.bf16.msra.mxu0 0
        %1010 = vmatprep.subr.bf16.mxu0 0
        %1011 = vmatpush1.bf16.msra.mxu0 0
        %1012 = vmatprep.subr.bf16.mxu0 0
        %1013 = vmatpush1.bf16.msra.mxu0 0
        %1014 = vmatprep.subr.bf16.mxu0 0
        %1015 = vmatpush1.bf16.msra.mxu0 0
        %1016 = vmatprep.subr.bf16.mxu0 0
        %1017 = vmatpush1.bf16.msra.mxu0 0
        %1018 = vmatprep.subr.bf16.mxu0 0
        %1019 = vmatpush1.bf16.msra.mxu0 0
        %1020 = vmatprep.subr.bf16.mxu0 0
        %1021 = vmatpush1.bf16.msra.mxu0 0
        %1022 = vmatprep.mubr.bf16.mxu0 0
        %1023 = vmatmul.mubr.bf16.gmra.mrb[0].mxu0 %v967
        %v1024 = vpop.f32.mrb[0].mxu0
        %v1025 = vadd.f32 %v952, %v1024
        %v1026 = vpop.f32.mrb[0].mxu0
        %v1027 = vpop.f32.mrb[0].mxu0
        %v1028 = vadd.f32 %v952, %v1027
        %v1029 = vpop.f32.mrb[0].mxu0
        %1030 = vmatprep.mubr.bf16.mxu0 0
        %1031 = vmatmul.mubr.bf16.gmra.mrb[0].mxu0 %v970
        %v1032 = vpop.f32.mrb[0].mxu0
        %v1033 = vadd.f32 %v952, %v1032
        %v1034 = vpop.f32.mrb[0].mxu0
        %v1035 = vpop.f32.mrb[0].mxu0
        %v1036 = vadd.f32 %v952, %v1035
        %v1037 = vpop.f32.mrb[0].mxu0
        %1038 = vmatprep.mubr.bf16.mxu0 0
        %1039 = vmatmul.mubr.bf16.gmra.mrb[0].mxu0 %v973
        %v1040 = vpop.f32.mrb[0].mxu0
        %v1041 = vadd.f32 %v952, %v1040
        %v1042 = vpop.f32.mrb[0].mxu0
        %v1043 = vpop.f32.mrb[0].mxu0
        %v1044 = vadd.f32 %v952, %v1043
        %v1045 = vpop.f32.mrb[0].mxu0
        %1046 = vmatprep.mubr.bf16.mxu0 0
        %1047 = vmatmul.mubr.bf16.gmra.mrb[0].mxu0 %v976
        %v1048 = vpop.f32.mrb[0].mxu0
        %v1049 = vadd.f32 %v952, %v1048
        %v1050 = vpop.f32.mrb[0].mxu0
        %v1051 = vpop.f32.mrb[0].mxu0
        %v1052 = vadd.f32 %v952, %v1051
        %v1053 = vpop.f32.mrb[0].mxu0
        %1054 = vmatprep.mubr.bf16.mxu0 0
        %1055 = vmatmul.mubr.bf16.gmra.mrb[0].mxu0 %v979
        %v1056 = vpop.f32.mrb[0].mxu0
        %v1057 = vadd.f32 %v952, %v1056
        %v1058 = vpop.f32.mrb[0].mxu0
        %v1059 = vpop.f32.mrb[0].mxu0
        %v1060 = vadd.f32 %v952, %v1059
        %v1061 = vpop.f32.mrb[0].mxu0
        %1062 = vmatprep.mubr.bf16.mxu0 0
        %1063 = vmatmul.mubr.bf16.gmra.mrb[0].mxu0 %v982
        %v1064 = vpop.f32.mrb[0].mxu0
        %v1065 = vadd.f32 %v952, %v1064
        %v1066 = vpop.f32.mrb[0].mxu0
        %v1067 = vpop.f32.mrb[0].mxu0
        %v1068 = vadd.f32 %v952, %v1067
        %v1069 = vpop.f32.mrb[0].mxu0
        %1070 = vmatprep.mubr.bf16.mxu0 0
        %1071 = vmatmul.mubr.bf16.gmra.mrb[0].mxu0 %v985
        %v1072 = vpop.f32.mrb[0].mxu0
        %v1073 = vadd.f32 %v952, %v1072
        %v1074 = vpop.f32.mrb[0].mxu0
        %v1075 = vpop.f32.mrb[0].mxu0
        %v1076 = vadd.f32 %v952, %v1075
        %v1077 = vpop.f32.mrb[0].mxu0
        %1078 = vmatprep.mubr.bf16.mxu0 0
        %1079 = vmatmul.mubr.bf16.gmra.mrb[0].mxu0 %v988
        %v1080 = vpop.f32.mrb[0].mxu0
        %v1081 = vadd.f32 %v952, %v1080
        %v1082 = vpop.f32.mrb[0].mxu0
        %v1083 = vpop.f32.mrb[0].mxu0
        %v1084 = vadd.f32 %v952, %v1083
        %v1085 = vpop.f32.mrb[0].mxu0
        %1086 = vdwg.mxu0
        %v1087 = vld [vmem:[%s5] sm:$0xf]
        %v1088 = vld [vmem:[%s5 + $0x4] sm:$0xf]
        %v1089 = vld [vmem:[%s5 + $0x8] sm:$0xf]
        %v1090 = vld [vmem:[%s5 + $0xc] sm:$0xf]
        %v1091 = vld [vmem:[%s6] sm:$0x1]
        %v1093 = vlaneseq
        %v1094 = vshrl.u32 %v1093, 7
        %v1095 = vsub.s32 0, %v1094
        %v1096 = vrot.slane %v1091, %v1095
        %v1102 = vunpack.c.l.b16 %v1087
        %v1103 = vunpack.c.l.b16 %v1088
        %v1104 = vunpack.c.l.b16 %v1089
        %v1105 = vunpack.c.l.b16 %v1090
        %v1106 = vpack.c.b16 %v1103, %v1102
        %v1107 = vpack.c.b16 %v1105, %v1104
        %1110 = vmatprep.subr.bf16.mxu0 0
        %1111 = vmatpush1.bf16.msra.mxu0 %v1106
        %1112 = vmatprep.subr.bf16.mxu0 0
        %1113 = vmatpush1.bf16.msra.mxu0 %v1107
        %1114 = vmatprep.subr.bf16.mxu0 0
        %1115 = vmatpush1.bf16.msra.mxu0 0
        %1116 = vmatprep.subr.bf16.mxu0 0
        %1117 = vmatpush1.bf16.msra.mxu0 0
        %1118 = vmatprep.subr.bf16.mxu0 0
        %1119 = vmatpush1.bf16.msra.mxu0 0
        %1120 = vmatprep.subr.bf16.mxu0 0
        %1121 = vmatpush1.bf16.msra.mxu0 0
        %1122 = vmatprep.subr.bf16.mxu0 0
        %1123 = vmatpush1.bf16.msra.mxu0 0
        %1124 = vmatprep.subr.bf16.mxu0 0
        %1125 = vmatpush1.bf16.msra.mxu0 0
        %1126 = vmatprep.subr.bf16.mxu0 0
        %1127 = vmatpush1.bf16.msra.mxu0 0
        %1128 = vmatprep.subr.bf16.mxu0 0
        %1129 = vmatpush1.bf16.msra.mxu0 0
        %1130 = vmatprep.subr.bf16.mxu0 0
        %1131 = vmatpush1.bf16.msra.mxu0 0
        %1132 = vmatprep.subr.bf16.mxu0 0
        %1133 = vmatpush1.bf16.msra.mxu0 0
        %1134 = vmatprep.subr.bf16.mxu0 0
        %1135 = vmatpush1.bf16.msra.mxu0 0
        %1136 = vmatprep.subr.bf16.mxu0 0
        %1137 = vmatpush1.bf16.msra.mxu0 0
        %1138 = vmatprep.subr.bf16.mxu0 0
        %1139 = vmatpush1.bf16.msra.mxu0 0
        %1140 = vmatprep.subr.bf16.mxu0 0
        %1141 = vmatpush1.bf16.msra.mxu0 0
        %1142 = vmatprep.mubr.bf16.mxu0 0
        %1143 = vmatmul.mubr.bf16.gmra.mrb[0].mxu0 %v967
        %v1144 = vpop.f32.mrb[0].mxu0
        %v1145 = vadd.f32 %v1096, %v1144
        %v1146 = vpop.f32.mrb[0].mxu0
        %v1147 = vpop.f32.mrb[0].mxu0
        %v1148 = vadd.f32 %v1096, %v1147
        %v1149 = vpop.f32.mrb[0].mxu0
        %1150 = vmatprep.mubr.bf16.mxu0 0
        %1151 = vmatmul.mubr.bf16.gmra.mrb[0].mxu0 %v970
        %v1152 = vpop.f32.mrb[0].mxu0
        %v1153 = vadd.f32 %v1096, %v1152
        %v1154 = vpop.f32.mrb[0].mxu0
        %v1155 = vpop.f32.mrb[0].mxu0
        %v1156 = vadd.f32 %v1096, %v1155
        %v1157 = vpop.f32.mrb[0].mxu0
        %1158 = vmatprep.mubr.bf16.mxu0 0
        %1159 = vmatmul.mubr.bf16.gmra.mrb[0].mxu0 %v973
        %v1160 = vpop.f32.mrb[0].mxu0
        %v1161 = vadd.f32 %v1096, %v1160
        %v1162 = vpop.f32.mrb[0].mxu0
        %v1163 = vpop.f32.mrb[0].mxu0
        %v1164 = vadd.f32 %v1096, %v1163
        %v1165 = vpop.f32.mrb[0].mxu0
        %1166 = vmatprep.mubr.bf16.mxu0 0
        %1167 = vmatmul.mubr.bf16.gmra.mrb[0].mxu0 %v976
        %v1168 = vpop.f32.mrb[0].mxu0
        %v1169 = vadd.f32 %v1096, %v1168
        %v1170 = vpop.f32.mrb[0].mxu0
        %v1171 = vpop.f32.mrb[0].mxu0
        %v1172 = vadd.f32 %v1096, %v1171
        %v1173 = vpop.f32.mrb[0].mxu0
        %1174 = vmatprep.mubr.bf16.mxu0 0
        %1175 = vmatmul.mubr.bf16.gmra.mrb[0].mxu0 %v979
        %v1176 = vpop.f32.mrb[0].mxu0
        %v1177 = vadd.f32 %v1096, %v1176
        %v1178 = vpop.f32.mrb[0].mxu0
        %v1179 = vpop.f32.mrb[0].mxu0
        %v1180 = vadd.f32 %v1096, %v1179
        %v1181 = vpop.f32.mrb[0].mxu0
        %1182 = vmatprep.mubr.bf16.mxu0 0
        %1183 = vmatmul.mubr.bf16.gmra.mrb[0].mxu0 %v982
        %v1184 = vpop.f32.mrb[0].mxu0
        %v1185 = vadd.f32 %v1096, %v1184
        %v1186 = vpop.f32.mrb[0].mxu0
        %v1187 = vpop.f32.mrb[0].mxu0
        %v1188 = vadd.f32 %v1096, %v1187
        %v1189 = vpop.f32.mrb[0].mxu0
        %1190 = vmatprep.mubr.bf16.mxu0 0
        %1191 = vmatmul.mubr.bf16.gmra.mrb[0].mxu0 %v985
        %v1192 = vpop.f32.mrb[0].mxu0
        %v1193 = vadd.f32 %v1096, %v1192
        %v1194 = vpop.f32.mrb[0].mxu0
        %v1195 = vpop.f32.mrb[0].mxu0
        %v1196 = vadd.f32 %v1096, %v1195
        %v1197 = vpop.f32.mrb[0].mxu0
        %1198 = vmatprep.mubr.bf16.mxu0 0
        %1199 = vmatmul.mubr.bf16.gmra.mrb[0].mxu0 %v988
        %v1200 = vpop.f32.mrb[0].mxu0
        %v1201 = vadd.f32 %v1096, %v1200
        %v1202 = vpop.f32.mrb[0].mxu0
        %v1203 = vpop.f32.mrb[0].mxu0
        %v1204 = vadd.f32 %v1096, %v1203
        %v1205 = vpop.f32.mrb[0].mxu0
        %1206 = vdwg.mxu0
        %v1207 = vld [vmem:[%s7] sm:$0xf]
        %v1208 = vld [vmem:[%s7 + $0x4] sm:$0xf]
        %v1209 = vld [vmem:[%s7 + $0x8] sm:$0xf]
        %v1210 = vld [vmem:[%s7 + $0xc] sm:$0xf]
        %v1211 = vld [vmem:[%s8] sm:$0x1]
        %v1213 = vlaneseq
        %v1214 = vshrl.u32 %v1213, 7
        %v1215 = vsub.s32 0, %v1214
        %v1216 = vrot.slane %v1211, %v1215
        %v1222 = vunpack.c.l.b16 %v1207
        %v1223 = vunpack.c.l.b16 %v1208
        %v1224 = vunpack.c.l.b16 %v1209
        %v1225 = vunpack.c.l.b16 %v1210
        %v1226 = vpack.c.b16 %v1223, %v1222
        %v1227 = vpack.c.b16 %v1225, %v1224
        %1230 = vmatprep.subr.bf16.mxu0 0
        %1231 = vmatpush1.bf16.msra.mxu0 %v1226
        %1232 = vmatprep.subr.bf16.mxu0 0
        %1233 = vmatpush1.bf16.msra.mxu0 %v1227
        %1234 = vmatprep.subr.bf16.mxu0 0
        %1235 = vmatpush1.bf16.msra.mxu0 0
        %1236 = vmatprep.subr.bf16.mxu0 0
        %1237 = vmatpush1.bf16.msra.mxu0 0
        %1238 = vmatprep.subr.bf16.mxu0 0
        %1239 = vmatpush1.bf16.msra.mxu0 0
        %1240 = vmatprep.subr.bf16.mxu0 0
        %1241 = vmatpush1.bf16.msra.mxu0 0
        %1242 = vmatprep.subr.bf16.mxu0 0
        %1243 = vmatpush1.bf16.msra.mxu0 0
        %1244 = vmatprep.subr.bf16.mxu0 0
        %1245 = vmatpush1.bf16.msra.mxu0 0
        %1246 = vmatprep.subr.bf16.mxu0 0
        %1247 = vmatpush1.bf16.msra.mxu0 0
        %1248 = vmatprep.subr.bf16.mxu0 0
        %1249 = vmatpush1.bf16.msra.mxu0 0
        %1250 = vmatprep.subr.bf16.mxu0 0
        %1251 = vmatpush1.bf16.msra.mxu0 0
        %1252 = vmatprep.subr.bf16.mxu0 0
        %1253 = vmatpush1.bf16.msra.mxu0 0
        %1254 = vmatprep.subr.bf16.mxu0 0
        %1255 = vmatpush1.bf16.msra.mxu0 0
        %1256 = vmatprep.subr.bf16.mxu0 0
        %1257 = vmatpush1.bf16.msra.mxu0 0
        %1258 = vmatprep.subr.bf16.mxu0 0
        %1259 = vmatpush1.bf16.msra.mxu0 0
        %1260 = vmatprep.subr.bf16.mxu0 0
        %1261 = vmatpush1.bf16.msra.mxu0 0
        %1262 = vmatprep.mubr.bf16.mxu0 0
        %1263 = vmatmul.mubr.bf16.gmra.mrb[0].mxu0 %v967
        %v1264 = vpop.f32.mrb[0].mxu0
        %v1265 = vadd.f32 %v1216, %v1264
        %v1266 = vpop.f32.mrb[0].mxu0
        %v1267 = vpop.f32.mrb[0].mxu0
        %v1268 = vadd.f32 %v1216, %v1267
        %v1269 = vpop.f32.mrb[0].mxu0
        %1270 = vmatprep.mubr.bf16.mxu0 0
        %1271 = vmatmul.mubr.bf16.gmra.mrb[0].mxu0 %v970
        %v1272 = vpop.f32.mrb[0].mxu0
        %v1273 = vadd.f32 %v1216, %v1272
        %v1274 = vpop.f32.mrb[0].mxu0
        %v1275 = vpop.f32.mrb[0].mxu0
        %v1276 = vadd.f32 %v1216, %v1275
        %v1277 = vpop.f32.mrb[0].mxu0
        %1278 = vmatprep.mubr.bf16.mxu0 0
        %1279 = vmatmul.mubr.bf16.gmra.mrb[0].mxu0 %v973
        %v1280 = vpop.f32.mrb[0].mxu0
        %v1281 = vadd.f32 %v1216, %v1280
        %v1282 = vpop.f32.mrb[0].mxu0
        %v1283 = vpop.f32.mrb[0].mxu0
        %v1284 = vadd.f32 %v1216, %v1283
        %v1285 = vpop.f32.mrb[0].mxu0
        %1286 = vmatprep.mubr.bf16.mxu0 0
        %1287 = vmatmul.mubr.bf16.gmra.mrb[0].mxu0 %v976
        %v1288 = vpop.f32.mrb[0].mxu0
        %v1289 = vadd.f32 %v1216, %v1288
        %v1290 = vpop.f32.mrb[0].mxu0
        %v1291 = vpop.f32.mrb[0].mxu0
        %v1292 = vadd.f32 %v1216, %v1291
        %v1293 = vpop.f32.mrb[0].mxu0
        %1294 = vmatprep.mubr.bf16.mxu0 0
        %1295 = vmatmul.mubr.bf16.gmra.mrb[0].mxu0 %v979
        %v1296 = vpop.f32.mrb[0].mxu0
        %v1297 = vadd.f32 %v1216, %v1296
        %v1298 = vpop.f32.mrb[0].mxu0
        %v1299 = vpop.f32.mrb[0].mxu0
        %v1300 = vadd.f32 %v1216, %v1299
        %v1301 = vpop.f32.mrb[0].mxu0
        %1302 = vmatprep.mubr.bf16.mxu0 0
        %1303 = vmatmul.mubr.bf16.gmra.mrb[0].mxu0 %v982
        %v1304 = vpop.f32.mrb[0].mxu0
        %v1305 = vadd.f32 %v1216, %v1304
        %v1306 = vpop.f32.mrb[0].mxu0
        %v1307 = vpop.f32.mrb[0].mxu0
        %v1308 = vadd.f32 %v1216, %v1307
        %v1309 = vpop.f32.mrb[0].mxu0
        %1310 = vmatprep.mubr.bf16.mxu0 0
        %1311 = vmatmul.mubr.bf16.gmra.mrb[0].mxu0 %v985
        %v1312 = vpop.f32.mrb[0].mxu0
        %v1313 = vadd.f32 %v1216, %v1312
        %v1314 = vpop.f32.mrb[0].mxu0
        %v1315 = vpop.f32.mrb[0].mxu0
        %v1316 = vadd.f32 %v1216, %v1315
        %v1317 = vpop.f32.mrb[0].mxu0
        %1318 = vmatprep.mubr.bf16.mxu0 0
        %1319 = vmatmul.mubr.bf16.gmra.mrb[0].mxu0 %v988
        %v1320 = vpop.f32.mrb[0].mxu0
        %v1321 = vadd.f32 %v1216, %v1320
        %v1322 = vpop.f32.mrb[0].mxu0
        %v1323 = vpop.f32.mrb[0].mxu0
        %v1324 = vadd.f32 %v1216, %v1323
        %v1325 = vpop.f32.mrb[0].mxu0
        %1326 = vdwg.mxu0
        %v1327 = vpack.c.bf16 %v1028, %v1025
        %v1328 = vpack.c.bf16 %v1036, %v1033
        %v1329 = vpack.c.bf16 %v1044, %v1041
        %v1330 = vpack.c.bf16 %v1052, %v1049
        %v1331 = vpack.c.bf16 %v1060, %v1057
        %v1332 = vpack.c.bf16 %v1068, %v1065
        %v1333 = vpack.c.bf16 %v1076, %v1073
        %v1334 = vpack.c.bf16 %v1084, %v1081
        %v1335 = vpack.c.bf16 %v1148, %v1145
        %v1336 = vpack.c.bf16 %v1156, %v1153
        %v1337 = vpack.c.bf16 %v1164, %v1161
        %v1338 = vpack.c.bf16 %v1172, %v1169
        %v1339 = vpack.c.bf16 %v1180, %v1177
        %v1340 = vpack.c.bf16 %v1188, %v1185
        %v1341 = vpack.c.bf16 %v1196, %v1193
        %v1342 = vpack.c.bf16 %v1204, %v1201
        %v1343 = vpack.c.bf16 %v1268, %v1265
        %v1344 = vpack.c.bf16 %v1276, %v1273
        %v1345 = vpack.c.bf16 %v1284, %v1281
        %v1346 = vpack.c.bf16 %v1292, %v1289
        %v1347 = vpack.c.bf16 %v1300, %v1297
        %v1348 = vpack.c.bf16 %v1308, %v1305
        %v1349 = vpack.c.bf16 %v1316, %v1313
        %v1350 = vpack.c.bf16 %v1324, %v1321
        %v1352 = vsel %vm716, %v1327, 0
        %v1355 = vsel %vm716, %v1328, 0
        %v1358 = vsel %vm716, %v1329, 0
        %v1361 = vsel %vm716, %v1330, 0
        %v1364 = vsel %vm716, %v1335, 0
        %v1367 = vsel %vm716, %v1336, 0
        %v1370 = vsel %vm716, %v1337, 0
        %v1373 = vsel %vm716, %v1338, 0
        %1375 = vmatprep.subr.bf16.mxu0 0
        %1376 = vmatpush1.bf16.xpose.msra.mxu0 %v1364
        %1377 = vmatprep.subr.bf16.mxu0 0
        %1378 = vmatpush1.bf16.xpose.msra.mxu0 %v1367
        %1379 = vmatprep.subr.bf16.mxu0 0
        %1380 = vmatpush1.bf16.xpose.msra.mxu0 %v1370
        %1381 = vmatprep.subr.bf16.mxu0 0
        %1382 = vmatpush1.bf16.xpose.msra.mxu0 %v1373
        %1383 = vmatprep.subr.bf16.mxu0 0
        %1384 = vmatpush1.bf16.xpose.msra.mxu0 0
        %1385 = vmatprep.subr.bf16.mxu0 0
        %1386 = vmatpush1.bf16.xpose.msra.mxu0 0
        %1387 = vmatprep.subr.bf16.mxu0 0
        %1388 = vmatpush1.bf16.xpose.msra.mxu0 0
        %1389 = vmatprep.subr.bf16.mxu0 0
        %1390 = vmatpush1.bf16.xpose.msra.mxu0 0
        %1391 = vmatprep.subr.bf16.mxu0 0
        %1392 = vmatpush1.bf16.xpose.msra.mxu0 0
        %1393 = vmatprep.subr.bf16.mxu0 0
        %1394 = vmatpush1.bf16.xpose.msra.mxu0 0
        %1395 = vmatprep.subr.bf16.mxu0 0
        %1396 = vmatpush1.bf16.xpose.msra.mxu0 0
        %1397 = vmatprep.subr.bf16.mxu0 0
        %1398 = vmatpush1.bf16.xpose.msra.mxu0 0
        %1399 = vmatprep.subr.bf16.mxu0 0
        %1400 = vmatpush1.bf16.xpose.msra.mxu0 0
        %1401 = vmatprep.subr.bf16.mxu0 0
        %1402 = vmatpush1.bf16.xpose.msra.mxu0 0
        %1403 = vmatprep.subr.bf16.mxu0 0
        %1404 = vmatpush1.bf16.xpose.msra.mxu0 0
        %1405 = vmatprep.subr.bf16.mxu0 0
        %1406 = vmatpush1.bf16.xpose.msra.mxu0 0
        %1407 = vmatprep.mubr.bf16.mxu0 0
        %1408 = vmatmul.mubr.bf16.gmra.mrb[0].mxu0 %v1352
        %v1409 = vpop.f32.mrb[0].mxu0
        %v1410 = vadd.f32 0.0, %v1409
        %v1411 = vpop.f32.mrb[0].mxu0
        %v1412 = vpop.f32.mrb[0].mxu0
        %v1413 = vadd.f32 0.0, %v1412
        %v1414 = vpop.f32.mrb[0].mxu0
        %1415 = vmatprep.mubr.bf16.mxu0 0
        %1416 = vmatmul.mubr.bf16.gmra.mrb[0].mxu0 %v1355
        %v1417 = vpop.f32.mrb[0].mxu0
        %v1418 = vadd.f32 0.0, %v1417
        %v1419 = vpop.f32.mrb[0].mxu0
        %v1420 = vpop.f32.mrb[0].mxu0
        %v1421 = vadd.f32 0.0, %v1420
        %v1422 = vpop.f32.mrb[0].mxu0
        %1423 = vmatprep.mubr.bf16.mxu0 0
        %1424 = vmatmul.mubr.bf16.gmra.mrb[0].mxu0 %v1358
        %v1425 = vpop.f32.mrb[0].mxu0
        %v1426 = vadd.f32 0.0, %v1425
        %v1427 = vpop.f32.mrb[0].mxu0
        %v1428 = vpop.f32.mrb[0].mxu0
        %v1429 = vadd.f32 0.0, %v1428
        %v1430 = vpop.f32.mrb[0].mxu0
        %1431 = vmatprep.mubr.bf16.mxu0 0
        %1432 = vmatmul.mubr.bf16.gmra.mrb[0].mxu0 %v1361
        %v1433 = vpop.f32.mrb[0].mxu0
        %v1434 = vadd.f32 0.0, %v1433
        %v1435 = vpop.f32.mrb[0].mxu0
        %v1436 = vpop.f32.mrb[0].mxu0
        %v1437 = vadd.f32 0.0, %v1436
        %v1438 = vpop.f32.mrb[0].mxu0
        %1439 = vdwg.mxu0
        %v1441 = vsel %vm716, %v1331, 0
        %v1444 = vsel %vm716, %v1332, 0
        %v1447 = vsel %vm716, %v1333, 0
        %v1450 = vsel %vm716, %v1334, 0
        %v1453 = vsel %vm716, %v1339, 0
        %v1456 = vsel %vm716, %v1340, 0
        %v1459 = vsel %vm716, %v1341, 0
        %v1462 = vsel %vm716, %v1342, 0
        %1464 = vmatprep.subr.bf16.mxu0 0
        %1465 = vmatpush1.bf16.xpose.msra.mxu0 %v1453
        %1466 = vmatprep.subr.bf16.mxu0 0
        %1467 = vmatpush1.bf16.xpose.msra.mxu0 %v1456
        %1468 = vmatprep.subr.bf16.mxu0 0
        %1469 = vmatpush1.bf16.xpose.msra.mxu0 %v1459
        %1470 = vmatprep.subr.bf16.mxu0 0
        %1471 = vmatpush1.bf16.xpose.msra.mxu0 %v1462
        %1472 = vmatprep.subr.bf16.mxu0 0
        %1473 = vmatpush1.bf16.xpose.msra.mxu0 0
        %1474 = vmatprep.subr.bf16.mxu0 0
        %1475 = vmatpush1.bf16.xpose.msra.mxu0 0
        %1476 = vmatprep.subr.bf16.mxu0 0
        %1477 = vmatpush1.bf16.xpose.msra.mxu0 0
        %1478 = vmatprep.subr.bf16.mxu0 0
        %1479 = vmatpush1.bf16.xpose.msra.mxu0 0
        %1480 = vmatprep.subr.bf16.mxu0 0
        %1481 = vmatpush1.bf16.xpose.msra.mxu0 0
        %1482 = vmatprep.subr.bf16.mxu0 0
        %1483 = vmatpush1.bf16.xpose.msra.mxu0 0
        %1484 = vmatprep.subr.bf16.mxu0 0
        %1485 = vmatpush1.bf16.xpose.msra.mxu0 0
        %1486 = vmatprep.subr.bf16.mxu0 0
        %1487 = vmatpush1.bf16.xpose.msra.mxu0 0
        %1488 = vmatprep.subr.bf16.mxu0 0
        %1489 = vmatpush1.bf16.xpose.msra.mxu0 0
        %1490 = vmatprep.subr.bf16.mxu0 0
        %1491 = vmatpush1.bf16.xpose.msra.mxu0 0
        %1492 = vmatprep.subr.bf16.mxu0 0
        %1493 = vmatpush1.bf16.xpose.msra.mxu0 0
        %1494 = vmatprep.subr.bf16.mxu0 0
        %1495 = vmatpush1.bf16.xpose.msra.mxu0 0
        %1496 = vmatprep.mubr.bf16.mxu0 0
        %1497 = vmatmul.mubr.bf16.gmra.mrb[0].mxu0 %v1441
        %v1498 = vpop.f32.mrb[0].mxu0
        %v1499 = vadd.f32 0.0, %v1498
        %v1500 = vpop.f32.mrb[0].mxu0
        %v1501 = vpop.f32.mrb[0].mxu0
        %v1502 = vadd.f32 0.0, %v1501
        %v1503 = vpop.f32.mrb[0].mxu0
        %1504 = vmatprep.mubr.bf16.mxu0 0
        %1505 = vmatmul.mubr.bf16.gmra.mrb[0].mxu0 %v1444
        %v1506 = vpop.f32.mrb[0].mxu0
        %v1507 = vadd.f32 0.0, %v1506
        %v1508 = vpop.f32.mrb[0].mxu0
        %v1509 = vpop.f32.mrb[0].mxu0
        %v1510 = vadd.f32 0.0, %v1509
        %v1511 = vpop.f32.mrb[0].mxu0
        %1512 = vmatprep.mubr.bf16.mxu0 0
        %1513 = vmatmul.mubr.bf16.gmra.mrb[0].mxu0 %v1447
        %v1514 = vpop.f32.mrb[0].mxu0
        %v1515 = vadd.f32 0.0, %v1514
        %v1516 = vpop.f32.mrb[0].mxu0
        %v1517 = vpop.f32.mrb[0].mxu0
        %v1518 = vadd.f32 0.0, %v1517
        %v1519 = vpop.f32.mrb[0].mxu0
        %1520 = vmatprep.mubr.bf16.mxu0 0
        %1521 = vmatmul.mubr.bf16.gmra.mrb[0].mxu0 %v1450
        %v1522 = vpop.f32.mrb[0].mxu0
        %v1523 = vadd.f32 0.0, %v1522
        %v1524 = vpop.f32.mrb[0].mxu0
        %v1525 = vpop.f32.mrb[0].mxu0
        %v1526 = vadd.f32 0.0, %v1525
        %v1527 = vpop.f32.mrb[0].mxu0
        %1528 = vdwg.mxu0
        %vm1529 = vcmask 523264
        %v1530 = vsel %vm1529, %v1410, -inf
        %1531 = vmax.xlane.f32.xlu0 %v1530
        %v1532 = vpop.xlane.xlu0 %1531
        %v1533 = vsel %vm1529, %v1413, -inf
        %1534 = vmax.xlane.f32.xlu0 %v1533
        %v1535 = vpop.xlane.xlu0 %1534
        %v1536 = vsel %vm1529, %v1418, -inf
        %1537 = vmax.xlane.f32.xlu0 %v1536
        %v1538 = vpop.xlane.xlu0 %1537
        %v1539 = vsel %vm1529, %v1421, -inf
        %1540 = vmax.xlane.f32.xlu0 %v1539
        %v1541 = vpop.xlane.xlu0 %1540
        %v1542 = vsel %vm1529, %v1426, -inf
        %1543 = vmax.xlane.f32.xlu0 %v1542
        %v1544 = vpop.xlane.xlu0 %1543
        %v1545 = vsel %vm1529, %v1429, -inf
        %1546 = vmax.xlane.f32.xlu0 %v1545
        %v1547 = vpop.xlane.xlu0 %1546
        %v1548 = vsel %vm1529, %v1434, -inf
        %1549 = vmax.xlane.f32.xlu0 %v1548
        %v1550 = vpop.xlane.xlu0 %1549
        %v1551 = vsel %vm1529, %v1437, -inf
        %1552 = vmax.xlane.f32.xlu0 %v1551
        %v1553 = vpop.xlane.xlu0 %1552
        %v1554 = vsel %vm1529, %v1499, -inf
        %1555 = vmax.xlane.f32.xlu0 %v1554
        %v1556 = vpop.xlane.xlu0 %1555
        %v1557 = vsel %vm1529, %v1502, -inf
        %1558 = vmax.xlane.f32.xlu0 %v1557
        %v1559 = vpop.xlane.xlu0 %1558
        %v1560 = vsel %vm1529, %v1507, -inf
        %1561 = vmax.xlane.f32.xlu0 %v1560
        %v1562 = vpop.xlane.xlu0 %1561
        %v1563 = vsel %vm1529, %v1510, -inf
        %1564 = vmax.xlane.f32.xlu0 %v1563
        %v1565 = vpop.xlane.xlu0 %1564
        %v1566 = vsel %vm1529, %v1515, -inf
        %1567 = vmax.xlane.f32.xlu0 %v1566
        %v1568 = vpop.xlane.xlu0 %1567
        %v1569 = vsel %vm1529, %v1518, -inf
        %1570 = vmax.xlane.f32.xlu0 %v1569
        %v1571 = vpop.xlane.xlu0 %1570
        %v1572 = vsel %vm1529, %v1523, -inf
        %1573 = vmax.xlane.f32.xlu0 %v1572
        %v1574 = vpop.xlane.xlu0 %1573
        %v1575 = vsel %vm1529, %v1526, -inf
        %1576 = vmax.xlane.f32.xlu0 %v1575
        %v1577 = vpop.xlane.xlu0 %1576
        %v1578 = vsub.f32 %v1410, %v1532
        %v1579 = vsub.f32 %v1413, %v1535
        %v1580 = vsub.f32 %v1418, %v1538
        %v1581 = vsub.f32 %v1421, %v1541
        %v1582 = vsub.f32 %v1426, %v1544
        %v1583 = vsub.f32 %v1429, %v1547
        %v1584 = vsub.f32 %v1434, %v1550
        %v1585 = vsub.f32 %v1437, %v1553
        %v1586 = vsub.f32 %v1499, %v1556
        %v1587 = vsub.f32 %v1502, %v1559
        %v1588 = vsub.f32 %v1507, %v1562
        %v1589 = vsub.f32 %v1510, %v1565
        %v1590 = vsub.f32 %v1515, %v1568
        %v1591 = vsub.f32 %v1518, %v1571
        %v1592 = vsub.f32 %v1523, %v1574
        %v1593 = vsub.f32 %v1526, %v1577
        %v1594 = vmul.f32 %v1578, 1.442695
        %v1595 = vpow.pop %v1594
        %v1596 = vmul.f32 %v1579, 1.442695
        %v1597 = vpow.pop %v1596
        %v1598 = vmul.f32 %v1580, 1.442695
        %v1599 = vpow.pop %v1598
        %v1600 = vmul.f32 %v1581, 1.442695
        %v1601 = vpow.pop %v1600
        %v1602 = vmul.f32 %v1582, 1.442695
        %v1603 = vpow.pop %v1602
        %v1604 = vmul.f32 %v1583, 1.442695
        %v1605 = vpow.pop %v1604
        %v1606 = vmul.f32 %v1584, 1.442695
        %v1607 = vpow.pop %v1606
        %v1608 = vmul.f32 %v1585, 1.442695
        %v1609 = vpow.pop %v1608
        %v1610 = vmul.f32 %v1586, 1.442695
        %v1611 = vpow.pop %v1610
        %v1612 = vmul.f32 %v1587, 1.442695
        %v1613 = vpow.pop %v1612
        %v1614 = vmul.f32 %v1588, 1.442695
        %v1615 = vpow.pop %v1614
        %v1616 = vmul.f32 %v1589, 1.442695
        %v1617 = vpow.pop %v1616
        %v1618 = vmul.f32 %v1590, 1.442695
        %v1619 = vpow.pop %v1618
        %v1620 = vmul.f32 %v1591, 1.442695
        %v1621 = vpow.pop %v1620
        %v1622 = vmul.f32 %v1592, 1.442695
        %v1623 = vpow.pop %v1622
        %v1624 = vmul.f32 %v1593, 1.442695
        %v1625 = vpow.pop %v1624
        %v1626 = vsel %vm1529, %v1595, 0.0
        %1627 = vadd.xlane.f32.xlu0 %v1626
        %v1628 = vpop.xlane.xlu0 %1627
        %v1629 = vsel %vm1529, %v1597, 0.0
        %1630 = vadd.xlane.f32.xlu0 %v1629
        %v1631 = vpop.xlane.xlu0 %1630
        %v1632 = vsel %vm1529, %v1599, 0.0
        %1633 = vadd.xlane.f32.xlu0 %v1632
        %v1634 = vpop.xlane.xlu0 %1633
        %v1635 = vsel %vm1529, %v1601, 0.0
        %1636 = vadd.xlane.f32.xlu0 %v1635
        %v1637 = vpop.xlane.xlu0 %1636
        %v1638 = vsel %vm1529, %v1603, 0.0
        %1639 = vadd.xlane.f32.xlu0 %v1638
        %v1640 = vpop.xlane.xlu0 %1639
        %v1641 = vsel %vm1529, %v1605, 0.0
        %1642 = vadd.xlane.f32.xlu0 %v1641
        %v1643 = vpop.xlane.xlu0 %1642
        %v1644 = vsel %vm1529, %v1607, 0.0
        %1645 = vadd.xlane.f32.xlu0 %v1644
        %v1646 = vpop.xlane.xlu0 %1645
        %v1647 = vsel %vm1529, %v1609, 0.0
        %1648 = vadd.xlane.f32.xlu0 %v1647
        %v1649 = vpop.xlane.xlu0 %1648
        %v1650 = vsel %vm1529, %v1611, 0.0
        %1651 = vadd.xlane.f32.xlu0 %v1650
        %v1652 = vpop.xlane.xlu0 %1651
        %v1653 = vsel %vm1529, %v1613, 0.0
        %1654 = vadd.xlane.f32.xlu0 %v1653
        %v1655 = vpop.xlane.xlu0 %1654
        %v1656 = vsel %vm1529, %v1615, 0.0
        %1657 = vadd.xlane.f32.xlu0 %v1656
        %v1658 = vpop.xlane.xlu0 %1657
        %v1659 = vsel %vm1529, %v1617, 0.0
        %1660 = vadd.xlane.f32.xlu0 %v1659
        %v1661 = vpop.xlane.xlu0 %1660
        %v1662 = vsel %vm1529, %v1619, 0.0
        %1663 = vadd.xlane.f32.xlu0 %v1662
        %v1664 = vpop.xlane.xlu0 %1663
        %v1665 = vsel %vm1529, %v1621, 0.0
        %1666 = vadd.xlane.f32.xlu0 %v1665
        %v1667 = vpop.xlane.xlu0 %1666
        %v1668 = vsel %vm1529, %v1623, 0.0
        %1669 = vadd.xlane.f32.xlu0 %v1668
        %v1670 = vpop.xlane.xlu0 %1669
        %v1671 = vsel %vm1529, %v1625, 0.0
        %1672 = vadd.xlane.f32.xlu0 %v1671
        %v1673 = vpop.xlane.xlu0 %1672
        %v1674 = vrcp.pop %v1628
        %v1675 = vrcp.pop %v1631
        %v1676 = vrcp.pop %v1634
        %v1677 = vrcp.pop %v1637
        %v1678 = vrcp.pop %v1640
        %v1679 = vrcp.pop %v1643
        %v1680 = vrcp.pop %v1646
        %v1681 = vrcp.pop %v1649
        %v1682 = vrcp.pop %v1652
        %v1683 = vrcp.pop %v1655
        %v1684 = vrcp.pop %v1658
        %v1685 = vrcp.pop %v1661
        %v1686 = vrcp.pop %v1664
        %v1687 = vrcp.pop %v1667
        %v1688 = vrcp.pop %v1670
        %v1689 = vrcp.pop %v1673
        %v1690 = vpack.c.bf16 %v1597, %v1595
        %v1691 = vpack.c.bf16 %v1601, %v1599
        %v1692 = vpack.c.bf16 %v1605, %v1603
        %v1693 = vpack.c.bf16 %v1609, %v1607
        %v1694 = vpack.c.bf16 %v1613, %v1611
        %v1695 = vpack.c.bf16 %v1617, %v1615
        %v1696 = vpack.c.bf16 %v1621, %v1619
        %v1697 = vpack.c.bf16 %v1625, %v1623
        %v1699 = vsel %vm1529, %v1690, 0
        %v1702 = vsel %vm1529, %v1691, 0
        %v1705 = vsel %vm1529, %v1692, 0
        %v1708 = vsel %vm1529, %v1693, 0
        %1710 = vmatprep.subr.bf16.mxu0 0
        %1711 = vmatpush1.bf16.msra.mxu0 %v1343
        %1712 = vmatprep.subr.bf16.mxu0 0
        %1713 = vmatpush1.bf16.msra.mxu0 %v1344
        %1714 = vmatprep.subr.bf16.mxu0 0
        %1715 = vmatpush1.bf16.msra.mxu0 %v1345
        %1716 = vmatprep.subr.bf16.mxu0 0
        %1717 = vmatpush1.bf16.msra.mxu0 %v1346
        %1718 = vmatprep.subr.bf16.mxu0 0
        %1719 = vmatpush1.bf16.msra.mxu0 0
        %1720 = vmatprep.subr.bf16.mxu0 0
        %1721 = vmatpush1.bf16.msra.mxu0 0
        %1722 = vmatprep.subr.bf16.mxu0 0
        %1723 = vmatpush1.bf16.msra.mxu0 0
        %1724 = vmatprep.subr.bf16.mxu0 0
        %1725 = vmatpush1.bf16.msra.mxu0 0
        %1726 = vmatprep.subr.bf16.mxu0 0
        %1727 = vmatpush1.bf16.msra.mxu0 0
        %1728 = vmatprep.subr.bf16.mxu0 0
        %1729 = vmatpush1.bf16.msra.mxu0 0
        %1730 = vmatprep.subr.bf16.mxu0 0
        %1731 = vmatpush1.bf16.msra.mxu0 0
        %1732 = vmatprep.subr.bf16.mxu0 0
        %1733 = vmatpush1.bf16.msra.mxu0 0
        %1734 = vmatprep.subr.bf16.mxu0 0
        %1735 = vmatpush1.bf16.msra.mxu0 0
        %1736 = vmatprep.subr.bf16.mxu0 0
        %1737 = vmatpush1.bf16.msra.mxu0 0
        %1738 = vmatprep.subr.bf16.mxu0 0
        %1739 = vmatpush1.bf16.msra.mxu0 0
        %1740 = vmatprep.subr.bf16.mxu0 0
        %1741 = vmatpush1.bf16.msra.mxu0 0
        %1742 = vmatprep.mubr.bf16.mxu0 0
        %1743 = vmatmul.mubr.bf16.gmra.mrb[0].mxu0 %v1699
        %v1744 = vpop.f32.mrb[0].mxu0
        %v1745 = vadd.f32 0.0, %v1744
        %v1746 = vpop.f32.mrb[0].mxu0
        %v1747 = vpop.f32.mrb[0].mxu0
        %v1748 = vadd.f32 0.0, %v1747
        %v1749 = vpop.f32.mrb[0].mxu0
        %1750 = vmatprep.mubr.bf16.mxu0 0
        %1751 = vmatmul.mubr.bf16.gmra.mrb[0].mxu0 %v1702
        %v1752 = vpop.f32.mrb[0].mxu0
        %v1753 = vadd.f32 0.0, %v1752
        %v1754 = vpop.f32.mrb[0].mxu0
        %v1755 = vpop.f32.mrb[0].mxu0
        %v1756 = vadd.f32 0.0, %v1755
        %v1757 = vpop.f32.mrb[0].mxu0
        %1758 = vmatprep.mubr.bf16.mxu0 0
        %1759 = vmatmul.mubr.bf16.gmra.mrb[0].mxu0 %v1705
        %v1760 = vpop.f32.mrb[0].mxu0
        %v1761 = vadd.f32 0.0, %v1760
        %v1762 = vpop.f32.mrb[0].mxu0
        %v1763 = vpop.f32.mrb[0].mxu0
        %v1764 = vadd.f32 0.0, %v1763
        %v1765 = vpop.f32.mrb[0].mxu0
        %1766 = vmatprep.mubr.bf16.mxu0 0
        %1767 = vmatmul.mubr.bf16.gmra.mrb[0].mxu0 %v1708
        %v1768 = vpop.f32.mrb[0].mxu0
        %v1769 = vadd.f32 0.0, %v1768
        %v1770 = vpop.f32.mrb[0].mxu0
        %v1771 = vpop.f32.mrb[0].mxu0
        %v1772 = vadd.f32 0.0, %v1771
        %v1773 = vpop.f32.mrb[0].mxu0
        %1774 = vdwg.mxu0
        %v1776 = vsel %vm1529, %v1694, 0
        %v1779 = vsel %vm1529, %v1695, 0
        %v1782 = vsel %vm1529, %v1696, 0
        %v1785 = vsel %vm1529, %v1697, 0
        %1787 = vmatprep.subr.bf16.mxu0 0
        %1788 = vmatpush1.bf16.msra.mxu0 %v1347
        %1789 = vmatprep.subr.bf16.mxu0 0
        %1790 = vmatpush1.bf16.msra.mxu0 %v1348
        %1791 = vmatprep.subr.bf16.mxu0 0
        %1792 = vmatpush1.bf16.msra.mxu0 %v1349
        %1793 = vmatprep.subr.bf16.mxu0 0
        %1794 = vmatpush1.bf16.msra.mxu0 %v1350
        %1795 = vmatprep.subr.bf16.mxu0 0
        %1796 = vmatpush1.bf16.msra.mxu0 0
        %1797 = vmatprep.subr.bf16.mxu0 0
        %1798 = vmatpush1.bf16.msra.mxu0 0
        %1799 = vmatprep.subr.bf16.mxu0 0
        %1800 = vmatpush1.bf16.msra.mxu0 0
        %1801 = vmatprep.subr.bf16.mxu0 0
        %1802 = vmatpush1.bf16.msra.mxu0 0
        %1803 = vmatprep.subr.bf16.mxu0 0
        %1804 = vmatpush1.bf16.msra.mxu0 0
        %1805 = vmatprep.subr.bf16.mxu0 0
        %1806 = vmatpush1.bf16.msra.mxu0 0
        %1807 = vmatprep.subr.bf16.mxu0 0
        %1808 = vmatpush1.bf16.msra.mxu0 0
        %1809 = vmatprep.subr.bf16.mxu0 0
        %1810 = vmatpush1.bf16.msra.mxu0 0
        %1811 = vmatprep.subr.bf16.mxu0 0
        %1812 = vmatpush1.bf16.msra.mxu0 0
        %1813 = vmatprep.subr.bf16.mxu0 0
        %1814 = vmatpush1.bf16.msra.mxu0 0
        %1815 = vmatprep.subr.bf16.mxu0 0
        %1816 = vmatpush1.bf16.msra.mxu0 0
        %1817 = vmatprep.subr.bf16.mxu0 0
        %1818 = vmatpush1.bf16.msra.mxu0 0
        %1819 = vmatprep.mubr.bf16.mxu0 0
        %1820 = vmatmul.mubr.bf16.gmra.mrb[0].mxu0 %v1776
        %v1821 = vpop.f32.mrb[0].mxu0
        %v1822 = vadd.f32 0.0, %v1821
        %v1823 = vpop.f32.mrb[0].mxu0
        %v1824 = vpop.f32.mrb[0].mxu0
        %v1825 = vadd.f32 0.0, %v1824
        %v1826 = vpop.f32.mrb[0].mxu0
        %1827 = vmatprep.mubr.bf16.mxu0 0
        %1828 = vmatmul.mubr.bf16.gmra.mrb[0].mxu0 %v1779
        %v1829 = vpop.f32.mrb[0].mxu0
        %v1830 = vadd.f32 0.0, %v1829
        %v1831 = vpop.f32.mrb[0].mxu0
        %v1832 = vpop.f32.mrb[0].mxu0
        %v1833 = vadd.f32 0.0, %v1832
        %v1834 = vpop.f32.mrb[0].mxu0
        %1835 = vmatprep.mubr.bf16.mxu0 0
        %1836 = vmatmul.mubr.bf16.gmra.mrb[0].mxu0 %v1782
        %v1837 = vpop.f32.mrb[0].mxu0
        %v1838 = vadd.f32 0.0, %v1837
        %v1839 = vpop.f32.mrb[0].mxu0
        %v1840 = vpop.f32.mrb[0].mxu0
        %v1841 = vadd.f32 0.0, %v1840
        %v1842 = vpop.f32.mrb[0].mxu0
        %1843 = vmatprep.mubr.bf16.mxu0 0
        %1844 = vmatmul.mubr.bf16.gmra.mrb[0].mxu0 %v1785
        %v1845 = vpop.f32.mrb[0].mxu0
        %v1846 = vadd.f32 0.0, %v1845
        %v1847 = vpop.f32.mrb[0].mxu0
        %v1848 = vpop.f32.mrb[0].mxu0
        %v1849 = vadd.f32 0.0, %v1848
        %v1850 = vpop.f32.mrb[0].mxu0
        %1851 = vdwg.mxu0
        %v1852 = vmul.f32 %v1745, %v1674
        %v1853 = vmul.f32 %v1748, %v1675
        %v1854 = vmul.f32 %v1753, %v1676
        %v1855 = vmul.f32 %v1756, %v1677
        %v1856 = vmul.f32 %v1761, %v1678
        %v1857 = vmul.f32 %v1764, %v1679
        %v1858 = vmul.f32 %v1769, %v1680
        %v1859 = vmul.f32 %v1772, %v1681
        %v1860 = vmul.f32 %v1822, %v1682
        %v1861 = vmul.f32 %v1825, %v1683
        %v1862 = vmul.f32 %v1830, %v1684
        %v1863 = vmul.f32 %v1833, %v1685
        %v1864 = vmul.f32 %v1838, %v1686
        %v1865 = vmul.f32 %v1841, %v1687
        %v1866 = vmul.f32 %v1846, %v1688
        %v1867 = vmul.f32 %v1849, %v1689
        %v1868 = vpack.c.bf16 %v1853, %v1852
        %v1869 = vpack.c.bf16 %v1855, %v1854
        %v1870 = vpack.c.bf16 %v1857, %v1856
        %v1871 = vpack.c.bf16 %v1859, %v1858
        %v1872 = vpack.c.bf16 %v1861, %v1860
        %v1873 = vpack.c.bf16 %v1863, %v1862
        %v1874 = vpack.c.bf16 %v1865, %v1864
        %v1875 = vpack.c.bf16 %v1867, %v1866
        %v1876 = vld [vmem:[%s9] sm:$0xf]
        %v1877 = vld [vmem:[%s9 + $0x4] sm:$0xf]
        %v1878 = vld [vmem:[%s9 + $0x8] sm:$0xf]
        %v1879 = vld [vmem:[%s9 + $0xc] sm:$0xf]
        %v1880 = vld [vmem:[%s10] sm:$0x1]
        %v1882 = vlaneseq
        %v1883 = vshrl.u32 %v1882, 7
        %v1884 = vsub.s32 0, %v1883
        %v1885 = vrot.slane %v1880, %v1884
        %v1891 = vunpack.c.l.b16 %v1876
        %v1892 = vunpack.c.l.b16 %v1877
        %v1893 = vunpack.c.l.b16 %v1878
        %v1894 = vunpack.c.l.b16 %v1879
        %v1895 = vpack.c.b16 %v1892, %v1891
        %v1896 = vpack.c.b16 %v1894, %v1893
        %v1900 = vsel %vm716, %v1868, 0
        %v1903 = vsel %vm716, %v1869, 0
        %v1906 = vsel %vm716, %v1870, 0
        %v1909 = vsel %vm716, %v1871, 0
        %v1912 = vsel %vm716, %v1872, 0
        %v1915 = vsel %vm716, %v1873, 0
        %v1918 = vsel %vm716, %v1874, 0
        %v1921 = vsel %vm716, %v1875, 0
        %1923 = vmatprep.subr.bf16.mxu0 0
        %1924 = vmatpush1.bf16.msra.mxu0 %v1895
        %1925 = vmatprep.subr.bf16.mxu0 0
        %1926 = vmatpush1.bf16.msra.mxu0 %v1896
        %1927 = vmatprep.subr.bf16.mxu0 0
        %1928 = vmatpush1.bf16.msra.mxu0 0
        %1929 = vmatprep.subr.bf16.mxu0 0
        %1930 = vmatpush1.bf16.msra.mxu0 0
        %1931 = vmatprep.subr.bf16.mxu0 0
        %1932 = vmatpush1.bf16.msra.mxu0 0
        %1933 = vmatprep.subr.bf16.mxu0 0
        %1934 = vmatpush1.bf16.msra.mxu0 0
        %1935 = vmatprep.subr.bf16.mxu0 0
        %1936 = vmatpush1.bf16.msra.mxu0 0
        %1937 = vmatprep.subr.bf16.mxu0 0
        %1938 = vmatpush1.bf16.msra.mxu0 0
        %1939 = vmatprep.subr.bf16.mxu0 0
        %1940 = vmatpush1.bf16.msra.mxu0 0
        %1941 = vmatprep.subr.bf16.mxu0 0
        %1942 = vmatpush1.bf16.msra.mxu0 0
        %1943 = vmatprep.subr.bf16.mxu0 0
        %1944 = vmatpush1.bf16.msra.mxu0 0
        %1945 = vmatprep.subr.bf16.mxu0 0
        %1946 = vmatpush1.bf16.msra.mxu0 0
        %1947 = vmatprep.subr.bf16.mxu0 0
        %1948 = vmatpush1.bf16.msra.mxu0 0
        %1949 = vmatprep.subr.bf16.mxu0 0
        %1950 = vmatpush1.bf16.msra.mxu0 0
        %1951 = vmatprep.subr.bf16.mxu0 0
        %1952 = vmatpush1.bf16.msra.mxu0 0
        %1953 = vmatprep.subr.bf16.mxu0 0
        %1954 = vmatpush1.bf16.msra.mxu0 0
        %1955 = vmatprep.mubr.bf16.mxu0 0
        %1956 = vmatmul.mubr.bf16.gmra.mrb[0].mxu0 %v1900
        %v1957 = vpop.f32.mrb[0].mxu0
        %v1958 = vadd.f32 %v1885, %v1957
        %v1959 = vpop.f32.mrb[0].mxu0
        %v1960 = vpop.f32.mrb[0].mxu0
        %v1961 = vadd.f32 %v1885, %v1960
        %v1962 = vpop.f32.mrb[0].mxu0
        %1963 = vmatprep.mubr.bf16.mxu0 0
        %1964 = vmatmul.mubr.bf16.gmra.mrb[0].mxu0 %v1903
        %v1965 = vpop.f32.mrb[0].mxu0
        %v1966 = vadd.f32 %v1885, %v1965
        %v1967 = vpop.f32.mrb[0].mxu0
        %v1968 = vpop.f32.mrb[0].mxu0
        %v1969 = vadd.f32 %v1885, %v1968
        %v1970 = vpop.f32.mrb[0].mxu0
        %1971 = vmatprep.mubr.bf16.mxu0 0
        %1972 = vmatmul.mubr.bf16.gmra.mrb[0].mxu0 %v1906
        %v1973 = vpop.f32.mrb[0].mxu0
        %v1974 = vadd.f32 %v1885, %v1973
        %v1975 = vpop.f32.mrb[0].mxu0
        %v1976 = vpop.f32.mrb[0].mxu0
        %v1977 = vadd.f32 %v1885, %v1976
        %v1978 = vpop.f32.mrb[0].mxu0
        %1979 = vmatprep.mubr.bf16.mxu0 0
        %1980 = vmatmul.mubr.bf16.gmra.mrb[0].mxu0 %v1909
        %v1981 = vpop.f32.mrb[0].mxu0
        %v1982 = vadd.f32 %v1885, %v1981
        %v1983 = vpop.f32.mrb[0].mxu0
        %v1984 = vpop.f32.mrb[0].mxu0
        %v1985 = vadd.f32 %v1885, %v1984
        %v1986 = vpop.f32.mrb[0].mxu0
        %1987 = vmatprep.mubr.bf16.mxu0 0
        %1988 = vmatmul.mubr.bf16.gmra.mrb[0].mxu0 %v1912
        %v1989 = vpop.f32.mrb[0].mxu0
        %v1990 = vadd.f32 %v1885, %v1989
        %v1991 = vpop.f32.mrb[0].mxu0
        %v1992 = vpop.f32.mrb[0].mxu0
        %v1993 = vadd.f32 %v1885, %v1992
        %v1994 = vpop.f32.mrb[0].mxu0
        %1995 = vmatprep.mubr.bf16.mxu0 0
        %1996 = vmatmul.mubr.bf16.gmra.mrb[0].mxu0 %v1915
        %v1997 = vpop.f32.mrb[0].mxu0
        %v1998 = vadd.f32 %v1885, %v1997
        %v1999 = vpop.f32.mrb[0].mxu0
        %v2000 = vpop.f32.mrb[0].mxu0
        %v2001 = vadd.f32 %v1885, %v2000
        %v2002 = vpop.f32.mrb[0].mxu0
        %2003 = vmatprep.mubr.bf16.mxu0 0
        %2004 = vmatmul.mubr.bf16.gmra.mrb[0].mxu0 %v1918
        %v2005 = vpop.f32.mrb[0].mxu0
        %v2006 = vadd.f32 %v1885, %v2005
        %v2007 = vpop.f32.mrb[0].mxu0
        %v2008 = vpop.f32.mrb[0].mxu0
        %v2009 = vadd.f32 %v1885, %v2008
        %v2010 = vpop.f32.mrb[0].mxu0
        %2011 = vmatprep.mubr.bf16.mxu0 0
        %2012 = vmatmul.mubr.bf16.gmra.mrb[0].mxu0 %v1921
        %v2013 = vpop.f32.mrb[0].mxu0
        %v2014 = vadd.f32 %v1885, %v2013
        %v2015 = vpop.f32.mrb[0].mxu0
        %v2016 = vpop.f32.mrb[0].mxu0
        %v2017 = vadd.f32 %v1885, %v2016
        %v2018 = vpop.f32.mrb[0].mxu0
        %2019 = vdwg.mxu0
        %2020 = vst.msk [vmem:[%s410] sm:$0xff] %vm716, %v1958
        %2021 = vst.msk [vmem:[%s410 + $0x8] sm:$0xff] %vm716, %v1961
        %2022 = vst.msk [vmem:[%s410 + $0x10] sm:$0xff] %vm716, %v1966
        %2023 = vst.msk [vmem:[%s410 + $0x18] sm:$0xff] %vm716, %v1969
        %2024 = vst.msk [vmem:[%s410 + $0x20] sm:$0xff] %vm716, %v1974
        %2025 = vst.msk [vmem:[%s410 + $0x28] sm:$0xff] %vm716, %v1977
        %2026 = vst.msk [vmem:[%s410 + $0x30] sm:$0xff] %vm716, %v1982
        %2027 = vst.msk [vmem:[%s410 + $0x38] sm:$0xff] %vm716, %v1985
        %2028 = vst.msk [vmem:[%s410 + $0x40] sm:$0xff] %vm716, %v1990
        %2029 = vst.msk [vmem:[%s410 + $0x48] sm:$0xff] %vm716, %v1993
        %2030 = vst.msk [vmem:[%s410 + $0x50] sm:$0xff] %vm716, %v1998
        %2031 = vst.msk [vmem:[%s410 + $0x58] sm:$0xff] %vm716, %v2001
        %2032 = vst.msk [vmem:[%s410 + $0x60] sm:$0xff] %vm716, %v2006
        %2033 = vst.msk [vmem:[%s410 + $0x68] sm:$0xff] %vm716, %v2009
        %2034 = vst.msk [vmem:[%s410 + $0x70] sm:$0xff] %vm716, %v2014
        %2035 = vst.msk [vmem:[%s410 + $0x78] sm:$0xff] %vm716, %v2017
        %s2036 = smul.u32 2, %s25
        %p2037 = scmp.lt.s32.totalorder %s2036, 3
        %s2038 = scalar_select %p2037, %s2036, 3
        %s2039 = smul.addr %s2038, 8
        %s2040 = smul.addr %s2039, 8
        %s2041 = scalar_lea.vmem %s11, %s2040
        // Predicated region
        $region69: #{tpu_custom_call.1} parent=63 // pred_check
          %p2042 = pneg %p279
        $region70: #{tpu_custom_call.1} parent=63 // pred_check_branch
          %2044 = sbr.rel (%p2042) target = $region72
        $region71: #{tpu_custom_call.1} parent=63 // pred_region
          %s2045 = smul.u32 2, %s25
        $region72: #{tpu_custom_call.1} parent=63 // pred_fallthru
          _
      $region64: #{tpu_custom_call.1} parent=5 // pred_fallthru
        _
      %p2046 = scmp.le.s32.totalorder 2, %s20
      // Predicated region
      $region73: #{tpu_custom_call.1} parent=5 // pred_check
        %p2047 = pneg %p2046
      $region74: #{tpu_custom_call.1} parent=5 // pred_check_branch
        %2049 = sbr.rel (%p2047) target = $region76
      $region75: #{tpu_custom_call.1} parent=5 // pred_region
        %s2050 = ssub.s32 %s20, 2
        // Predicated region
        $region77: #{tpu_custom_call.1} parent=75 // pred_check
          %p2051 = pneg %p285
        $region78: #{tpu_custom_call.1} parent=75 // pred_check_branch
          %2053 = sbr.rel (%p2051) target = $region80
        $region79: #{tpu_custom_call.1} parent=75 // pred_region
          %s2054 = smul.u32 2, %s26
          %p2055 = scmp.lt.s32.totalorder %s2054, 3
          %s2056 = scalar_select %p2055, %s2054, 3
          %s2057 = smul.addr %s2056, 8
          %s2058 = smul.addr %s2057, 8
          %s2059 = scalar_lea.vmem %s11, %s2058
        $region80: #{tpu_custom_call.1} parent=75 // pred_fallthru
          _
      $region76: #{tpu_custom_call.1} parent=5 // pred_fallthru
        _
    $region6: #{tpu_custom_call.1} parent=1 // loop_footer
      %s24 = sadd.s32 1, %s20
    $region7: #{tpu_custom_call.1} parent=1 // loop_footer_branch
      %19 = sbr.rel target = $region3
    $region8: #{tpu_custom_call.1} parent=1 // loop_exit
      _
    %2060 = vsyncpa [#allocation3], 1
    %s2061 = scalar_lea.sflag [#allocation3], 1
    %2062 = vsyncpa %s2061, 1

</llo_original>
